<compile_context>
chip_gen: v5e
topology: v5e:2x2
jax: 0.10.0
libtpu: 0.0.40
codegen_flags: <defaults>
</compile_context>

<pallas_src>
import functools

import jax
import jax.numpy as jnp
from jax.experimental import pallas as pl
from jax.experimental.pallas import tpu as pltpu

# Module constants (from Attention.__init__)
L = 500          # feature_extractor_part2 output dim
LP = 512         # L padded up to a multiple of 128 for clean tiles
D = 256          # attention hidden dim
K = 1            # number of attention heads
IN_FEAT = 256
N_CLASSES = 2
NEG_INF = -1e30


def _amil_kernel(n_ref,                                      # scalar prefetch (SMEM)
                 x_ref, w1_ref, b1_ref, wa1_ref, ba1_ref, wa2_ref, ba2_ref,
                 acc_out_ref, mx_out_ref, l_out_ref,         # per-partition outputs
                 mmax_ref, l_ref, acc_ref):                  # VMEM scratch
    c = pl.program_id(0)               # core-partition index ("parallel")
    j = pl.program_id(1)               # tile index inside the partition ("arbitrary")
    nj = pl.num_programs(1)
    tn = x_ref.shape[0]

    @pl.when(j == 0)
    def _():
        mmax_ref[...] = jnp.full(mmax_ref.shape, NEG_INF, jnp.float32)
        l_ref[...] = jnp.zeros(l_ref.shape, jnp.float32)
        acc_ref[...] = jnp.zeros(acc_ref.shape, jnp.float32)

    # Row validity from the *unclamped* global tile index (the x index_map may
    # clamp duplicate trailing tiles; those rows are masked out here).
    row = (c * nj + j) * tn + jax.lax.broadcasted_iota(jnp.int32, (tn, 1), 0)
    valid = row < n_ref[0]                                             # (tn, 1)

    # Mask out-of-bag rows and cast to bf16 in one pass over the x tile.
    xb = jnp.where(valid, x_ref[...], 0.0).astype(jnp.bfloat16)        # (tn, 256)

    # --- feature_extractor_part2: Linear(256, L) + ReLU ---
    # bf16 MXU with f32 accumulation; bias + ReLU + bf16 downcast fused so h
    # goes through VMEM exactly once, in bf16.
    h = jnp.dot(xb, w1_ref[...], preferred_element_type=jnp.float32)
    h = jnp.maximum(h + b1_ref[...], 0.0).astype(jnp.bfloat16)         # (tn, LP)

    # --- attention: Linear(L, D) + Tanh (f32 elementwise, EUP tanh) ---
    a1 = jnp.dot(h, wa1_ref[...], preferred_element_type=jnp.float32)
    a1 = jnp.tanh(a1 + ba1_ref[...])                                   # (tn, D)

    # --- K = 1 score head as a VPU/XLU lane reduction (MXU stays short) ---
    s = jnp.sum(a1 * wa2_ref[...], axis=1, keepdims=True) + ba2_ref[...]
    s = jnp.where(valid, s, NEG_INF)                                   # (tn, 1)

    # --- online-softmax accumulation of sum_i softmax(s)_i * h_i ---
    m_new = jnp.maximum(mmax_ref[...], jnp.max(s, axis=0, keepdims=True))
    alpha = jnp.exp(mmax_ref[...] - m_new)                             # (1, 1)
    p = jnp.exp(s - m_new)                                             # (tn, 1), 0 for masked rows
    l_ref[...] = alpha * l_ref[...] + jnp.sum(p, axis=0, keepdims=True)

    # Pooling reduction on the MXU: ones(1,tn) @ (p*h) == p^T @ h, expressed in
    # the standard (non-transposed) matmul orientation, f32 accumulation.
    ph = p.astype(jnp.bfloat16) * h                                    # (tn, LP) bf16
    pool = jnp.dot(jnp.ones((1, tn), jnp.bfloat16), ph,
                   preferred_element_type=jnp.float32)                 # (1, LP)
    acc_ref[...] = alpha * acc_ref[...] + pool
    mmax_ref[...] = m_new

    @pl.when(j == nj - 1)
    def _():
        acc_out_ref[...] = acc_ref[...]
        mx_out_ref[...] = mmax_ref[...]
        l_out_ref[...] = l_ref[...]


@functools.partial(jax.jit, static_argnames=("tile_n",))
def amil_attention(x, params, tile_n=None):
    """x: (1, N, IN_FEAT). f32 accepted (cast to bf16 per tile in-kernel);
    pass bf16 x from the producer for the best HBM efficiency."""
    (w1, b1, wa1, ba1, wa2, ba2, wc, bc) = params
    x2d = jnp.squeeze(x, axis=0)                                       # (N, 256)
    n = x2d.shape[0]

    if tile_n is None:
        tile_n = min(1024, max(8, ((n + 7) // 8) * 8))
    num_tiles = -(-n // tile_n)
    nc = min(2, num_tiles)               # v7x megacore split; harmless on 1-TC chips
    tiles_per_core = -(-num_tiles // nc)

    # ---- pad L (500 -> 512) with zeros so padded lanes contribute exactly 0 ----
    pad_l = LP - L
    w1p = jnp.pad(w1, ((0, 0), (0, pad_l))).astype(jnp.bfloat16)       # (256, 512)
    b1p = jnp.pad(b1, ((0, 0), (0, pad_l)))                            # (1, 512)
    wa1p = jnp.pad(wa1, ((0, pad_l), (0, 0))).astype(jnp.bfloat16)     # (512, 256)
    wa2r = wa2.T                                                       # (1, 256) f32
    n_arr = jnp.array([n], jnp.int32)

    def x_map(c, j, n_s):
        # Clamp so an empty trailing tile on the last partition re-reads the
        # final valid block; its rows are masked out inside the kernel.
        return (jnp.minimum(c * tiles_per_core + j, num_tiles - 1), 0)

    acc_p, mx_p, l_p = pl.pallas_call(
        _amil_kernel,
        out_shape=(
            jax.ShapeDtypeStruct((nc, 1, LP), jnp.float32),
            jax.ShapeDtypeStruct((nc, 1, 1), jnp.float32),
            jax.ShapeDtypeStruct((nc, 1, 1), jnp.float32),
        ),
        grid_spec=pltpu.PrefetchScalarGridSpec(
            num_scalar_prefetch=1,
            grid=(nc, tiles_per_core),
            in_specs=[
                pl.BlockSpec((tile_n, IN_FEAT), x_map),                  # x tile
                pl.BlockSpec((IN_FEAT, LP), lambda c, j, n_s: (0, 0)),   # W1
                pl.BlockSpec((1, LP),       lambda c, j, n_s: (0, 0)),   # b1
                pl.BlockSpec((LP, D),       lambda c, j, n_s: (0, 0)),   # Wa1
                pl.BlockSpec((1, D),        lambda c, j, n_s: (0, 0)),   # ba1
                pl.BlockSpec((1, D),        lambda c, j, n_s: (0, 0)),   # Wa2^T
                pl.BlockSpec((1, 1),        lambda c, j, n_s: (0, 0)),   # ba2
            ],
            out_specs=(
                pl.BlockSpec((None, 1, LP), lambda c, j, n_s: (c, 0, 0)),  # acc
                pl.BlockSpec((None, 1, 1),  lambda c, j, n_s: (c, 0, 0)),  # max
                pl.BlockSpec((None, 1, 1),  lambda c, j, n_s: (c, 0, 0)),  # denom
            ),
            scratch_shapes=[
                pltpu.VMEM((1, 1), jnp.float32),    # running max
                pltpu.VMEM((1, 1), jnp.float32),    # running softmax denominator
                pltpu.VMEM((1, LP), jnp.float32),   # running weighted sum of H
            ],
        ),
        compiler_params=pltpu.CompilerParams(
            dimension_semantics=("parallel", "arbitrary"),
            vmem_limit_bytes=32 * 1024 * 1024,
        ),
    )(n_arr, x2d, w1p, b1p, wa1p, ba1, wa2r, ba2)

    # Exact log-sum-exp merge of the per-partition partials, normalization, and
    # the tiny (1,500)@(500,2) classifier head, all in f32 (one small XLA fusion).
    acc = acc_p[:, 0, :]                                 # (nc, LP)
    mx = mx_p[:, 0, 0]                                   # (nc,)
    den = l_p[:, 0, 0]                                   # (nc,)
    g = jnp.max(mx)
    w = jnp.exp(mx - g)                                  # (nc,)
    m_pad = jnp.sum(w[:, None] * acc, axis=0, keepdims=True) / jnp.sum(w * den)
    m = m_pad[:, :L]                                     # (K, L)
    y_prob = m @ wc + bc                                 # (K, 2)
    return m, y_prob


def init_params(key):
    """Deterministic synthetic parameters (Linear weights stored as (in, out))."""
    ks = jax.random.split(key, 8)
    scale = 0.05
    w1 = scale * jax.random.normal(ks[0], (IN_FEAT, L), jnp.float32)
    b1 = scale * jax.random.normal(ks[1], (1, L), jnp.float32)
    wa1 = scale * jax.random.normal(ks[2], (L, D), jnp.float32)
    ba1 = scale * jax.random.normal(ks[3], (1, D), jnp.float32)
    wa2 = scale * jax.random.normal(ks[4], (D, K), jnp.float32)
    ba2 = scale * jax.random.normal(ks[5], (1, K), jnp.float32)
    wc = scale * jax.random.normal(ks[6], (L * K, N_CLASSES), jnp.float32)
    bc = scale * jax.random.normal(ks[7], (1, N_CLASSES), jnp.float32)
    return (w1, b1, wa1, ba1, wa2, ba2, wc, bc)


def reference_forward(x, params, use_bf16=False):
    """Pure-JAX reference matching the PyTorch forward (optionally with the
    same bf16-input / f32-accumulate GEMMs and bf16 pooling the kernel uses)."""
    (w1, b1, wa1, ba1, wa2, ba2, wc, bc) = params
    xs = jnp.squeeze(x, axis=0)
    if use_bf16:
        h = jnp.dot(xs.astype(jnp.bfloat16), w1.astype(jnp.bfloat16),
                    preferred_element_type=jnp.float32) + b1
        h = jax.nn.relu(h)
        hb = h.astype(jnp.bfloat16)
        a = jnp.dot(hb, wa1.astype(jnp.bfloat16),
                    preferred_element_type=jnp.float32) + ba1
        a = jnp.tanh(a) @ wa2 + ba2                      # (N, K)
        a_sm = jax.nn.softmax(a.T, axis=1)               # (K, N)
        m = jnp.dot(a_sm.astype(jnp.bfloat16), hb,
                    preferred_element_type=jnp.float32)  # (K, L)
    else:
        h = jax.nn.relu(xs @ w1 + b1)
        a = jnp.tanh(h @ wa1 + ba1) @ wa2 + ba2          # (N, K)
        a_sm = jax.nn.softmax(a.T, axis=1)               # (K, N)
        m = a_sm @ h                                     # (K, L)
    y_prob = m @ wc + bc                                 # (K, 2)
    return m, y_prob


if __name__ == "__main__":
    key = jax.random.PRNGKey(0)
    kx, kp = jax.random.split(key)
    params = init_params(kp)

    def check(x, tile_n=None, tag=""):
        m, y = amil_attention(x, params) if tile_n is None else \
            amil_attention(x, params, tile_n=tile_n)
        jax.block_until_ready((m, y))
        assert m.shape == (K, L) and y.shape == (K, N_CLASSES), tag
        m_bf, y_bf = reference_forward(x, params, use_bf16=True)
        m_f, y_f = reference_forward(x, params, use_bf16=False)
        assert jnp.allclose(m, m_bf, atol=1e-2, rtol=1e-2), tag
        assert jnp.allclose(y, y_bf, atol=1e-2, rtol=1e-2), tag
        assert jnp.allclose(m, m_f, atol=5e-2, rtol=5e-2), tag
        assert jnp.allclose(y, y_f, atol=5e-2, rtol=5e-2), tag

    # Case 1: small bag, single tile, single partition.
    x1 = jax.random.normal(kx, (1, 16, IN_FEAT), jnp.float32)
    check(x1, tag="case1")

    # Case 2: multi-tile, 2-way partition split, ragged last tile (grid (2, 2)).
    x2 = jax.random.normal(jax.random.fold_in(kx, 1), (1, 200, IN_FEAT),
                           jnp.float32)
    check(x2, tile_n=64, tag="case2")

    # Case 3: odd tile count -> partition 1 gets a clamped/empty duplicate tile
    # (exercises the -inf score mask and the log-sum-exp combine; grid (2, 3)).
    x3 = jax.random.normal(jax.random.fold_in(kx, 2), (1, 300, IN_FEAT),
                           jnp.float32)
    check(x3, tile_n=64, tag="case3")

    print("KERNEL_OK")
</pallas_src>

<mosaic_0001>
module attributes {stable_mosaic.version = 11 : i64} {
  func.func @_amil_kernel(%arg0: i32, %arg1: i32, %arg2: memref<1xi32, #tpu.memory_space<smem>>, %arg3: memref<16x256xf32, #tpu.memory_space<vmem>>, %arg4: memref<256x512xbf16, #tpu.memory_space<vmem>>, %arg5: memref<1x512xf32, #tpu.memory_space<vmem>>, %arg6: memref<512x256xbf16, #tpu.memory_space<vmem>>, %arg7: memref<1x256xf32, #tpu.memory_space<vmem>>, %arg8: memref<1x256xf32, #tpu.memory_space<vmem>>, %arg9: memref<1x1xf32, #tpu.memory_space<vmem>>, %arg10: memref<1x1x512xf32, #tpu.memory_space<vmem>>, %arg11: memref<1x1x1xf32, #tpu.memory_space<vmem>>, %arg12: memref<1x1x1xf32, #tpu.memory_space<vmem>>, %arg13: memref<1x1xf32, #tpu.memory_space<vmem>>, %arg14: memref<1x1xf32, #tpu.memory_space<vmem>>, %arg15: memref<1x512xf32, #tpu.memory_space<vmem>>) attributes {dimension_semantics = [#tpu.dimension_semantics<parallel>, #tpu.dimension_semantics<arbitrary>], iteration_bounds = array<i64: 1, 1>, scalar_prefetch = 1 : i64, scratch_operands = 3 : i64, tpu.core_type = #tpu.core_type<tc>, window_params = [{transform_indices = @transform_0, window_bounds = array<i64: 16, 256>}, {pipeline_mode = #tpu.pipeline_mode<synchronous>, transform_indices = @transform_1, window_bounds = array<i64: 256, 512>}, {pipeline_mode = #tpu.pipeline_mode<synchronous>, transform_indices = @transform_2, window_bounds = array<i64: 1, 512>}, {pipeline_mode = #tpu.pipeline_mode<synchronous>, transform_indices = @transform_3, window_bounds = array<i64: 512, 256>}, {pipeline_mode = #tpu.pipeline_mode<synchronous>, transform_indices = @transform_4, window_bounds = array<i64: 1, 256>}, {pipeline_mode = #tpu.pipeline_mode<synchronous>, transform_indices = @transform_5, window_bounds = array<i64: 1, 256>}, {pipeline_mode = #tpu.pipeline_mode<synchronous>, transform_indices = @transform_6, window_bounds = array<i64: 1, 1>}, {transform_indices = @transform_7, window_bounds = array<i64: 1, 1, 512>}, {transform_indices = @transform_8, window_bounds = array<i64: 1, 1, 1>}, {transform_indices = @transform_9, window_bounds = array<i64: 1, 1, 1>}]} {
    %c0_i32 = arith.constant 0 : i32
    %0 = arith.cmpi eq, %arg1, %c0_i32 : i32
    %1 = arith.extui %0 : i1 to i32
    %c0_i32_0 = arith.constant 0 : i32
    %2 = arith.cmpi ne, %1, %c0_i32_0 : i32
    scf.if %2 {
      %cst_40 = arith.constant -1.000000e+30 : f32
      %72 = vector.broadcast %cst_40 : f32 to vector<1x1xf32>
      %c0_41 = arith.constant 0 : index
      %c0_42 = arith.constant 0 : index
      %73 = vector.load %arg13[%c0_41, %c0_42] : memref<1x1xf32, #tpu.memory_space<vmem>>, vector<1x1xf32>
      tpu.vector_store %arg13[%c0_41, %c0_42], %72 {strides = array<i32>} : memref<1x1xf32, #tpu.memory_space<vmem>>, vector<1x1xf32>,
      %cst_43 = arith.constant 0.000000e+00 : f32
      %74 = vector.broadcast %cst_43 : f32 to vector<1x1xf32>
      %c0_44 = arith.constant 0 : index
      %c0_45 = arith.constant 0 : index
      %75 = vector.load %arg14[%c0_44, %c0_45] : memref<1x1xf32, #tpu.memory_space<vmem>>, vector<1x1xf32>
      tpu.vector_store %arg14[%c0_44, %c0_45], %74 {strides = array<i32>} : memref<1x1xf32, #tpu.memory_space<vmem>>, vector<1x1xf32>,
      %cst_46 = arith.constant 0.000000e+00 : f32
      %76 = vector.broadcast %cst_46 : f32 to vector<1x512xf32>
      %c0_47 = arith.constant 0 : index
      %c0_48 = arith.constant 0 : index
      %77 = vector.load %arg15[%c0_47, %c0_48] : memref<1x512xf32, #tpu.memory_space<vmem>>, vector<1x512xf32>
      tpu.vector_store %arg15[%c0_47, %c0_48], %76 {strides = array<i32>} : memref<1x512xf32, #tpu.memory_space<vmem>>, vector<1x512xf32>,
    } else {
    }
    %c1_i32 = arith.constant 1 : i32
    %3 = arith.muli %arg0, %c1_i32 : i32
    %4 = arith.addi %3, %arg1 : i32
    %c16_i32 = arith.constant 16 : i32
    %5 = arith.muli %4, %c16_i32 : i32
    %6 = tpu.iota {dimensions = array<i32: 0>} : vector<16x1xi32>
    %7 = vector.broadcast %5 : i32 to vector<16x1xi32>
    %8 = arith.addi %7, %6 : vector<16x1xi32>
    %c0 = arith.constant 0 : index
    %9 = memref.load %arg2[%c0] : memref<1xi32, #tpu.memory_space<smem>>
    %10 = vector.broadcast %9 : i32 to vector<16x1xi32>
    %11 = arith.cmpi slt, %8, %10 : vector<16x1xi32>
    %c0_1 = arith.constant 0 : index
    %c0_2 = arith.constant 0 : index
    %12 = vector.load %arg3[%c0_1, %c0_2] : memref<16x256xf32, #tpu.memory_space<vmem>>, vector<16x256xf32>
    %cst = arith.constant 0.000000e+00 : f32
    %13 = vector.shape_cast %11 : vector<16x1xi1> to vector<16x1xi1>
    %14 = vector.broadcast %13 : vector<16x1xi1> to vector<16x256xi1>
    %15 = vector.broadcast %cst : f32 to vector<16x256xf32>
    %16 = arith.select %14, %12, %15 : vector<16x256xi1>, vector<16x256xf32>
    %17 = arith.truncf %16 : vector<16x256xf32> to vector<16x256xbf16>
    %c0_3 = arith.constant 0 : index
    %c0_4 = arith.constant 0 : index
    %18 = vector.load %arg4[%c0_3, %c0_4] : memref<256x512xbf16, #tpu.memory_space<vmem>>, vector<256x512xbf16>
    %cst_5 = arith.constant dense<0.000000e+00> : vector<16x512xf32>
    %19 = tpu.matmul %17, %18, %cst_5 {dimension_numbers = #tpu.dot_dimension_numbers<[1], [0], [0], [1], [0, 0, 1, 1], [], []>} : vector<16x256xbf16>, vector<256x512xbf16>, vector<16x512xf32> -> vector<16x512xf32>
    %c0_6 = arith.constant 0 : index
    %c0_7 = arith.constant 0 : index
    %20 = vector.load %arg5[%c0_6, %c0_7] : memref<1x512xf32, #tpu.memory_space<vmem>>, vector<1x512xf32>
    %21 = vector.broadcast %20 : vector<1x512xf32> to vector<16x512xf32>
    %22 = arith.addf %19, %21 : vector<16x512xf32>
    %cst_8 = arith.constant 0.000000e+00 : f32
    %23 = vector.broadcast %cst_8 : f32 to vector<16x512xf32>
    %24 = arith.maximumf %22, %23 : vector<16x512xf32>
    %25 = arith.truncf %24 : vector<16x512xf32> to vector<16x512xbf16>
    %c0_9 = arith.constant 0 : index
    %c0_10 = arith.constant 0 : index
    %26 = vector.load %arg6[%c0_9, %c0_10] : memref<512x256xbf16, #tpu.memory_space<vmem>>, vector<512x256xbf16>
    %cst_11 = arith.constant dense<0.000000e+00> : vector<16x256xf32>
    %27 = tpu.matmul %25, %26, %cst_11 {dimension_numbers = #tpu.dot_dimension_numbers<[1], [0], [0], [1], [0, 0, 1, 1], [], []>} : vector<16x512xbf16>, vector<512x256xbf16>, vector<16x256xf32> -> vector<16x256xf32>
    %c0_12 = arith.constant 0 : index
    %c0_13 = arith.constant 0 : index
    %28 = vector.load %arg7[%c0_12, %c0_13] : memref<1x256xf32, #tpu.memory_space<vmem>>, vector<1x256xf32>
    %29 = vector.broadcast %28 : vector<1x256xf32> to vector<16x256xf32>
    %30 = arith.addf %27, %29 : vector<16x256xf32>
    %31 = math.tanh %30 : vector<16x256xf32>
    %c0_14 = arith.constant 0 : index
    %c0_15 = arith.constant 0 : index
    %32 = vector.load %arg8[%c0_14, %c0_15] : memref<1x256xf32, #tpu.memory_space<vmem>>, vector<1x256xf32>
    %33 = vector.broadcast %32 : vector<1x256xf32> to vector<16x256xf32>
    %34 = arith.mulf %31, %33 : vector<16x256xf32>
    %cst_16 = arith.constant dense<0.000000e+00> : vector<16xf32>
    %35 = vector.multi_reduction <add>, %34, %cst_16 [1] : vector<16x256xf32> to vector<16xf32>
    %36 = vector.shape_cast %35 : vector<16xf32> to vector<16x1xf32>
    %c0_17 = arith.constant 0 : index
    %c0_18 = arith.constant 0 : index
    %37 = vector.load %arg9[%c0_17, %c0_18] : memref<1x1xf32, #tpu.memory_space<vmem>>, vector<1x1xf32>
    %38 = vector.broadcast %37 : vector<1x1xf32> to vector<16x1xf32>
    %39 = arith.addf %36, %38 : vector<16x1xf32>
    %cst_19 = arith.constant -1.000000e+30 : f32
    %40 = vector.broadcast %cst_19 : f32 to vector<16x1xf32>
    %41 = arith.select %11, %39, %40 : vector<16x1xi1>, vector<16x1xf32>
    %c0_20 = arith.constant 0 : index
    %c0_21 = arith.constant 0 : index
    %42 = vector.load %arg13[%c0_20, %c0_21] : memref<1x1xf32, #tpu.memory_space<vmem>>, vector<1x1xf32>
    %cst_22 = arith.constant dense<0xFF800000> : vector<1xf32>
    %43 = vector.multi_reduction <maximumf>, %41, %cst_22 [0] : vector<16x1xf32> to vector<1xf32>
    %44 = vector.shape_cast %43 : vector<1xf32> to vector<1x1xf32>
    %45 = arith.maximumf %42, %44 : vector<1x1xf32>
    %c0_23 = arith.constant 0 : index
    %c0_24 = arith.constant 0 : index
    %46 = vector.load %arg13[%c0_23, %c0_24] : memref<1x1xf32, #tpu.memory_space<vmem>>, vector<1x1xf32>
    %47 = arith.subf %46, %45 : vector<1x1xf32>
    %48 = math.exp %47 : vector<1x1xf32>
    %49 = vector.broadcast %45 : vector<1x1xf32> to vector<16x1xf32>
    %50 = arith.subf %41, %49 : vector<16x1xf32>
    %51 = math.exp %50 : vector<16x1xf32>
    %c0_25 = arith.constant 0 : index
    %c0_26 = arith.constant 0 : index
    %52 = vector.load %arg14[%c0_25, %c0_26] : memref<1x1xf32, #tpu.memory_space<vmem>>, vector<1x1xf32>
    %53 = arith.mulf %48, %52 : vector<1x1xf32>
    %cst_27 = arith.constant dense<0.000000e+00> : vector<1xf32>
    %54 = vector.multi_reduction <add>, %51, %cst_27 [0] : vector<16x1xf32> to vector<1xf32>
    %55 = vector.shape_cast %54 : vector<1xf32> to vector<1x1xf32>
    %56 = arith.addf %53, %55 : vector<1x1xf32>
    %c0_28 = arith.constant 0 : index
    %c0_29 = arith.constant 0 : index
    %57 = vector.load %arg14[%c0_28, %c0_29] : memref<1x1xf32, #tpu.memory_space<vmem>>, vector<1x1xf32>
    tpu.vector_store %arg14[%c0_28, %c0_29], %56 {strides = array<i32>} : memref<1x1xf32, #tpu.memory_space<vmem>>, vector<1x1xf32>,
    %58 = arith.truncf %51 : vector<16x1xf32> to vector<16x1xbf16>
    %59 = vector.broadcast %58 : vector<16x1xbf16> to vector<16x512xbf16>
    %60 = arith.mulf %59, %25 : vector<16x512xbf16>
    %cst_30 = arith.constant 1.000000e+00 : bf16
    %61 = vector.broadcast %cst_30 : bf16 to vector<1x16xbf16>
    %cst_31 = arith.constant dense<0.000000e+00> : vector<1x512xf32>
    %62 = tpu.matmul %61, %60, %cst_31 {dimension_numbers = #tpu.dot_dimension_numbers<[1], [0], [0], [1], [0, 0, 1, 1], [], []>} : vector<1x16xbf16>, vector<16x512xbf16>, vector<1x512xf32> -> vector<1x512xf32>
    %c0_32 = arith.constant 0 : index
    %c0_33 = arith.constant 0 : index
    %63 = vector.load %arg15[%c0_32, %c0_33] : memref<1x512xf32, #tpu.memory_space<vmem>>, vector<1x512xf32>
    %64 = vector.broadcast %48 : vector<1x1xf32> to vector<1x512xf32>
    %65 = arith.mulf %64, %63 : vector<1x512xf32>
    %66 = arith.addf %65, %62 : vector<1x512xf32>
    %c0_34 = arith.constant 0 : index
    %c0_35 = arith.constant 0 : index
    %67 = vector.load %arg15[%c0_34, %c0_35] : memref<1x512xf32, #tpu.memory_space<vmem>>, vector<1x512xf32>
    tpu.vector_store %arg15[%c0_34, %c0_35], %66 {strides = array<i32>} : memref<1x512xf32, #tpu.memory_space<vmem>>, vector<1x512xf32>,
    %c0_36 = arith.constant 0 : index
    %c0_37 = arith.constant 0 : index
    %68 = vector.load %arg13[%c0_36, %c0_37] : memref<1x1xf32, #tpu.memory_space<vmem>>, vector<1x1xf32>
    tpu.vector_store %arg13[%c0_36, %c0_37], %45 {strides = array<i32>} : memref<1x1xf32, #tpu.memory_space<vmem>>, vector<1x1xf32>,
    %c0_i32_38 = arith.constant 0 : i32
    %69 = arith.cmpi eq, %arg1, %c0_i32_38 : i32
    %70 = arith.extui %69 : i1 to i32
    %c0_i32_39 = arith.constant 0 : i32
    %71 = arith.cmpi ne, %70, %c0_i32_39 : i32
    scf.if %71 {
      %c0_40 = arith.constant 0 : index
      %c0_41 = arith.constant 0 : index
      %72 = vector.load %arg15[%c0_40, %c0_41] : memref<1x512xf32, #tpu.memory_space<vmem>>, vector<1x512xf32>
      %c0_42 = arith.constant 0 : index
      %c0_43 = arith.constant 0 : index
      %c0_44 = arith.constant 0 : index
      %73 = vector.load %arg10[%c0_42, %c0_43, %c0_44] : memref<1x1x512xf32, #tpu.memory_space<vmem>>, vector<1x1x512xf32>
      %74 = vector.shape_cast %73 : vector<1x1x512xf32> to vector<1x512xf32>
      %75 = vector.shape_cast %72 : vector<1x512xf32> to vector<1x1x512xf32>
      tpu.vector_store %arg10[%c0_42, %c0_43, %c0_44], %75 {strides = array<i32>} : memref<1x1x512xf32, #tpu.memory_space<vmem>>, vector<1x1x512xf32>,
      %c0_45 = arith.constant 0 : index
      %c0_46 = arith.constant 0 : index
      %76 = vector.load %arg13[%c0_45, %c0_46] : memref<1x1xf32, #tpu.memory_space<vmem>>, vector<1x1xf32>
      %c0_47 = arith.constant 0 : index
      %c0_48 = arith.constant 0 : index
      %c0_49 = arith.constant 0 : index
      %77 = vector.load %arg11[%c0_47, %c0_48, %c0_49] : memref<1x1x1xf32, #tpu.memory_space<vmem>>, vector<1x1x1xf32>
      %78 = vector.shape_cast %77 : vector<1x1x1xf32> to vector<1x1xf32>
      %79 = vector.shape_cast %76 : vector<1x1xf32> to vector<1x1x1xf32>
      tpu.vector_store %arg11[%c0_47, %c0_48, %c0_49], %79 {strides = array<i32>} : memref<1x1x1xf32, #tpu.memory_space<vmem>>, vector<1x1x1xf32>,
      %c0_50 = arith.constant 0 : index
      %c0_51 = arith.constant 0 : index
      %80 = vector.load %arg14[%c0_50, %c0_51] : memref<1x1xf32, #tpu.memory_space<vmem>>, vector<1x1xf32>
      %c0_52 = arith.constant 0 : index
      %c0_53 = arith.constant 0 : index
      %c0_54 = arith.constant 0 : index
      %81 = vector.load %arg12[%c0_52, %c0_53, %c0_54] : memref<1x1x1xf32, #tpu.memory_space<vmem>>, vector<1x1x1xf32>
      %82 = vector.shape_cast %81 : vector<1x1x1xf32> to vector<1x1xf32>
      %83 = vector.shape_cast %80 : vector<1x1xf32> to vector<1x1x1xf32>
      tpu.vector_store %arg12[%c0_52, %c0_53, %c0_54], %83 {strides = array<i32>} : memref<1x1x1xf32, #tpu.memory_space<vmem>>, vector<1x1x1xf32>,
    } else {
    }
    return
  }
  func.func @transform_0(%arg0: i32, %arg1: i32, %arg2: memref<1xi32, #tpu.memory_space<smem>>) -> (i32, i32) {
    %c1_i32 = arith.constant 1 : i32
    %0 = arith.muli %arg0, %c1_i32 : i32
    %1 = arith.addi %0, %arg1 : i32
    %c0_i32 = arith.constant 0 : i32
    %2 = arith.minsi %1, %c0_i32 : i32
    %c0_i32_0 = arith.constant 0 : i32
    %c0_i32_1 = arith.constant 0 : i32
    return %2, %c0_i32_0 : i32, i32
  }
  func.func @transform_1(%arg0: i32, %arg1: i32, %arg2: memref<1xi32, #tpu.memory_space<smem>>) -> (i32, i32) {
    %c0_i32 = arith.constant 0 : i32
    %c0_i32_0 = arith.constant 0 : i32
    %c0_i32_1 = arith.constant 0 : i32
    return %c0_i32, %c0_i32_0 : i32, i32
  }
  func.func @transform_2(%arg0: i32, %arg1: i32, %arg2: memref<1xi32, #tpu.memory_space<smem>>) -> (i32, i32) {
    %c0_i32 = arith.constant 0 : i32
    %c0_i32_0 = arith.constant 0 : i32
    %c0_i32_1 = arith.constant 0 : i32
    return %c0_i32, %c0_i32_0 : i32, i32
  }
  func.func @transform_3(%arg0: i32, %arg1: i32, %arg2: memref<1xi32, #tpu.memory_space<smem>>) -> (i32, i32) {
    %c0_i32 = arith.constant 0 : i32
    %c0_i32_0 = arith.constant 0 : i32
    %c0_i32_1 = arith.constant 0 : i32
    return %c0_i32, %c0_i32_0 : i32, i32
  }
  func.func @transform_4(%arg0: i32, %arg1: i32, %arg2: memref<1xi32, #tpu.memory_space<smem>>) -> (i32, i32) {
    %c0_i32 = arith.constant 0 : i32
    %c0_i32_0 = arith.constant 0 : i32
    %c0_i32_1 = arith.constant 0 : i32
    return %c0_i32, %c0_i32_0 : i32, i32
  }
  func.func @transform_5(%arg0: i32, %arg1: i32, %arg2: memref<1xi32, #tpu.memory_space<smem>>) -> (i32, i32) {
    %c0_i32 = arith.constant 0 : i32
    %c0_i32_0 = arith.constant 0 : i32
    %c0_i32_1 = arith.constant 0 : i32
    return %c0_i32, %c0_i32_0 : i32, i32
  }
  func.func @transform_6(%arg0: i32, %arg1: i32, %arg2: memref<1xi32, #tpu.memory_space<smem>>) -> (i32, i32) {
    %c0_i32 = arith.constant 0 : i32
    %c0_i32_0 = arith.constant 0 : i32
    %c0_i32_1 = arith.constant 0 : i32
    return %c0_i32, %c0_i32_0 : i32, i32
  }
  func.func @transform_7(%arg0: i32, %arg1: i32, %arg2: memref<1xi32, #tpu.memory_space<smem>>) -> (i32, i32, i32) {
    %c0_i32 = arith.constant 0 : i32
    %c0_i32_0 = arith.constant 0 : i32
    %c0_i32_1 = arith.constant 0 : i32
    return %arg0, %c0_i32, %c0_i32_0 : i32, i32, i32
  }
  func.func @transform_8(%arg0: i32, %arg1: i32, %arg2: memref<1xi32, #tpu.memory_space<smem>>) -> (i32, i32, i32) {
    %c0_i32 = arith.constant 0 : i32
    %c0_i32_0 = arith.constant 0 : i32
    %c0_i32_1 = arith.constant 0 : i32
    return %arg0, %c0_i32, %c0_i32_0 : i32, i32, i32
  }
  func.func @transform_9(%arg0: i32, %arg1: i32, %arg2: memref<1xi32, #tpu.memory_space<smem>>) -> (i32, i32, i32) {
    %c0_i32 = arith.constant 0 : i32
    %c0_i32_0 = arith.constant 0 : i32
    %c0_i32_1 = arith.constant 0 : i32
    return %arg0, %c0_i32, %c0_i32_0 : i32, i32, i32
  }
}

</mosaic_0001>

<llo_original>
// kernel: amil_attention.1
$region0: #{amil_attention.1}
  #allocation0 [shape = 'u32[]', space=smem, size = 0x4, offset = 0x4, fixed_abs, tag = 'smem constant byte address 0x4 - core index']
  #allocation1 [shape = 'u32[72,128]{1,0:T(1,128)}', space=vmem, size = 0x9000, scoped, tag = 'internal scratch']
  #allocation2 [shape = 'f32[1,1]{1,0:T(1,128)}', space=vmem, size = 0x200, scoped, tag = 'scratch operand']
  #allocation3 [shape = 'f32[1,1]{1,0:T(1,128)}', space=vmem, size = 0x200, scoped, tag = 'scratch operand']
  #allocation4 [shape = 'f32[1,512]{1,0:T(1,128)}', space=vmem, size = 0x800, scoped, tag = 'scratch operand']
  #allocation5 [shape = 's32[1]{0}', space=sflag, size = 0x4, scoped, tag = 'scoped memory for amil_attention.1']
  #allocation6 [shape = 's32[1]{0:T(128)S(6)}', space=smem, size = 0x200, scoped, tag = 'prefetched SMEM operand 0']
  #allocation7 [shape = 'f32[1,1]{1,0:T(1,128)S(1)}', space=vmem, size = 0x200, scoped, tag = 'scoped memory for amil_attention.1']
  %s0 = inlined_call_operand.<no memory space> [shape: s32[1], index: 0, kind: input, shape index: {}]
  %s1 = inlined_call_operand.vmem [shape: f32[16,256], index: 1, kind: input, shape index: {}]
  %s2 = inlined_call_operand.vmem [shape: bf16[256,512], index: 2, kind: input, shape index: {}]
  %s3 = inlined_call_operand.vmem [shape: f32[1,512], index: 3, kind: input, shape index: {}]
  %s4 = inlined_call_operand.vmem [shape: bf16[512,256], index: 4, kind: input, shape index: {}]
  %s5 = inlined_call_operand.vmem [shape: f32[1,256], index: 5, kind: input, shape index: {}]
  %s6 = inlined_call_operand.vmem [shape: f32[1,256], index: 6, kind: input, shape index: {}]
  %s7 = inlined_call_operand.<no memory space> [shape: f32[1,1], index: 7, kind: input, shape index: {}]
  %s8 = inlined_call_operand.vmem [shape: f32[1,1,512], index: 8, kind: output, shape index: {0}]
  %s9 = inlined_call_operand.hbm [shape: f32[1,1,1], index: 9, kind: output, shape index: {1}]
  %s10 = inlined_call_operand.hbm [shape: f32[1,1,1], index: 10, kind: output, shape index: {2}]
  %11 = xla_tuple %s8, %s9, %s10
  %s12 = sld [smem:[#allocation0]]
  $region62: #{amil_attention.1} parent=0
    _
  %s14 = ssub.s32 1, %s12
  %s15 = scalar_select 0, %s14, %s12
  %16 = sst [smem:[#allocation6]] %s0
  %v17 = vstv %s7
  %18 = vst [vmem:[#allocation7] sm:$0x1] %v17
  $region1: #{amil_attention.1} parent=0
    #allocation8 [shape = 'u8[512]{0}', space=vmem, size = 0x400, scoped, tag = 'output window, operand 1, single buffered']
    #allocation9 [shape = 's32[1]{0}', space=sflag, size = 0x4, scoped, tag = 'scoped memory for amil_attention.1']
    #allocation10 [shape = 'u8[512]{0}', space=vmem, size = 0x400, scoped, tag = 'output window, operand 2, single buffered']
    #allocation11 [shape = 's32[1]{0}', space=sflag, size = 0x4, scoped, tag = 'scoped memory for amil_attention.1']
    %19 = vsyncpa [#allocation9], 0
    %20 = vsyncpa [#allocation11], 0
    // Predicated region
    $region2: #{amil_attention.1} parent=1 // pred_check
      _
    $region3: #{amil_attention.1} parent=1 // pred_check_branch
      %22 = sbr.rel (0) target = $region5
    $region4: #{amil_attention.1} parent=1 // pred_region
      %s23 = sadd.s32 0, 0
      %p24 = scmp.lt.s32.totalorder %s23, 0
      %s25 = scalar_select %p24, %s23, 0
      %s26 = smul.u32 2, %s25
      %p27 = scmp.lt.s32.totalorder %s26, 1
      %s28 = scalar_select %p27, %s26, 1
      %s29 = smul.addr %s28, 2
      %s30 = smul.addr %s29, 8
      %s31 = scalar_lea.vmem %s1, %s30
      %s32 = sadd.s32 0, 0
      %p33 = scmp.lt.s32.totalorder %s32, 0
      %s34 = scalar_select %p33, %s32, 0
      %s35 = smul.u32 2, %s34
    $region5: #{amil_attention.1} parent=1 // pred_fallthru
      _
    // Predicated region
    $region6: #{amil_attention.1} parent=1 // pred_check
      _
    $region7: #{amil_attention.1} parent=1 // pred_check_branch
      %37 = sbr.rel (0) target = $region9
    $region8: #{amil_attention.1} parent=1 // pred_region
      _
    $region9: #{amil_attention.1} parent=1 // pred_fallthru
      _
    // Predicated region
    $region10: #{amil_attention.1} parent=1 // pred_check
      _
    $region11: #{amil_attention.1} parent=1 // pred_check_branch
      %39 = sbr.rel (0) target = $region13
    $region12: #{amil_attention.1} parent=1 // pred_region
      _
    $region13: #{amil_attention.1} parent=1 // pred_fallthru
      _
    // Predicated region
    $region14: #{amil_attention.1} parent=1 // pred_check
      _
    $region15: #{amil_attention.1} parent=1 // pred_check_branch
      %41 = sbr.rel (0) target = $region17
    $region16: #{amil_attention.1} parent=1 // pred_region
      _
    $region17: #{amil_attention.1} parent=1 // pred_fallthru
      _
    // Predicated region
    $region18: #{amil_attention.1} parent=1 // pred_check
      _
    $region19: #{amil_attention.1} parent=1 // pred_check_branch
      %43 = sbr.rel (0) target = $region21
    $region20: #{amil_attention.1} parent=1 // pred_region
      _
    $region21: #{amil_attention.1} parent=1 // pred_fallthru
      _
    // Predicated region
    $region22: #{amil_attention.1} parent=1 // pred_check
      _
    $region23: #{amil_attention.1} parent=1 // pred_check_branch
      %45 = sbr.rel (0) target = $region25
    $region24: #{amil_attention.1} parent=1 // pred_region
      _
    $region25: #{amil_attention.1} parent=1 // pred_fallthru
      _
    // Predicated region
    $region26: #{amil_attention.1} parent=1 // pred_check
      _
    $region27: #{amil_attention.1} parent=1 // pred_check_branch
      %47 = sbr.rel (0) target = $region29
    $region28: #{amil_attention.1} parent=1 // pred_region
      _
    $region29: #{amil_attention.1} parent=1 // pred_fallthru
      _
    %s48 = sadd.s32 0, 0
    %p49 = scmp.lt.s32.totalorder %s48, 0
    %s50 = scalar_select %p49, %s48, 0
    %s51 = smul.u32 2, %s50
    %p52 = scmp.lt.s32.totalorder %s51, 1
    %s53 = scalar_select %p52, %s51, 1
    %s54 = smul.addr %s53, 2
    %s55 = smul.addr %s54, 8
    %s56 = scalar_lea.vmem %s1, %s55
    %s57 = sadd.s32 0, 0
    %p58 = scmp.lt.s32.totalorder %s57, 0
    %s59 = scalar_select %p58, %s57, 0
    %s60 = smul.u32 2, %s59
    %p61 = scmp.lt.s32.totalorder %s60, 1
    %s62 = scalar_select %p61, %s60, 1
    %s63 = smul.addr %s62, 2
    %s64 = smul.addr %s63, 8
    %s65 = scalar_lea.vmem %s1, %s64
    %s66 = sadd.s32 0, 0
    %p67 = scmp.lt.s32.totalorder %s66, 0
    %s68 = scalar_select %p67, %s66, 0
    %s69 = smul.u32 2, %s68
    %p72 = scmp.eq.s32.totalorder 0, 0
    // Predicated region
    $region30: #{amil_attention.1} parent=1 // pred_check
      %p73 = pneg %p72
    $region31: #{amil_attention.1} parent=1 // pred_check_branch
      %75 = sbr.rel (%p73) target = $region33
    $region32: #{amil_attention.1} parent=1 // pred_region
      %vm76 = vcmask 0
      %77 = vst.msk [vmem:[#allocation2] sm:$0x1] %vm76, -1e+30
      %78 = vst.msk [vmem:[#allocation3] sm:$0x1] %vm76, 0.0
      %v79 = vlaneseq
      %vm80 = vcmp.ge.s32.totalorder %v79, 0
      %vm81 = vcmp.lt.s32.totalorder %v79, 512
      %vm82 = vmand %vm80, %vm81
      %83 = vst.msk [vmem:[#allocation4] sm:$0xf] %vm82, 0.0
    $region33: #{amil_attention.1} parent=1 // pred_fallthru
      _
    %s84 = sadd.s32 0, 0
    %s85 = smul.u32 %s84, 16
    %v86 = vlaneseq
    %v87 = vshrl.u32 %v86, 7
    %v88 = vadd.s32 %v87, 8
    %v89 = vstv %s85
    %v90 = vadd.s32 %v89, %v87
    %v91 = vadd.s32 %v89, %v88
    %s92 = sld [smem:[#allocation6]]
    %v93 = vstv %s92
    %vm94 = vcmp.lt.s32.totalorder %v90, %v93
    %vm95 = vcmp.lt.s32.totalorder %v91, %v93
    %v96 = vld [vmem:[%s65] sm:$0xff]
    %v97 = vld [vmem:[%s65 + $0x8] sm:$0xff]
    %v98 = vld [vmem:[%s65 + $0x10] sm:$0xff]
    %v99 = vld [vmem:[%s65 + $0x18] sm:$0xff]
    %v100 = vsel %vm94, 1, 0
    %v101 = vsel %vm95, 1, 0
    %vm102 = vcmp.eq.s32.totalorder %v100, 1
    %vm103 = vcmp.eq.s32.totalorder %v101, 1
    %v104 = vsel %vm102, %v96, 0.0
    %v105 = vsel %vm102, %v97, 0.0
    %v106 = vsel %vm103, %v98, 0.0
    %v107 = vsel %vm103, %v99, 0.0
    %v108 = vpack.c.bf16 %v106, %v104
    %v109 = vpack.c.bf16 %v107, %v105
    %v110 = vld [vmem:[%s2] sm:$0xff]
    %v111 = vld [vmem:[%s2 + $0x8] sm:$0xff]
    %v112 = vld [vmem:[%s2 + $0x10] sm:$0xff]
    %v113 = vld [vmem:[%s2 + $0x18] sm:$0xff]
    %v114 = vld [vmem:[%s2 + $0x20] sm:$0xff]
    %v115 = vld [vmem:[%s2 + $0x28] sm:$0xff]
    %v116 = vld [vmem:[%s2 + $0x30] sm:$0xff]
    %v117 = vld [vmem:[%s2 + $0x38] sm:$0xff]
    %v118 = vld [vmem:[%s2 + $0x40] sm:$0xff]
    %v119 = vld [vmem:[%s2 + $0x48] sm:$0xff]
    %v120 = vld [vmem:[%s2 + $0x50] sm:$0xff]
    %v121 = vld [vmem:[%s2 + $0x58] sm:$0xff]
    %v122 = vld [vmem:[%s2 + $0x60] sm:$0xff]
    %v123 = vld [vmem:[%s2 + $0x68] sm:$0xff]
    %v124 = vld [vmem:[%s2 + $0x70] sm:$0xff]
    %v125 = vld [vmem:[%s2 + $0x78] sm:$0xff]
    %v126 = vld [vmem:[%s2 + $0x80] sm:$0xff]
    %v127 = vld [vmem:[%s2 + $0x88] sm:$0xff]
    %v128 = vld [vmem:[%s2 + $0x90] sm:$0xff]
    %v129 = vld [vmem:[%s2 + $0x98] sm:$0xff]
    %v130 = vld [vmem:[%s2 + $0xa0] sm:$0xff]
    %v131 = vld [vmem:[%s2 + $0xa8] sm:$0xff]
    %v132 = vld [vmem:[%s2 + $0xb0] sm:$0xff]
    %v133 = vld [vmem:[%s2 + $0xb8] sm:$0xff]
    %v134 = vld [vmem:[%s2 + $0xc0] sm:$0xff]
    %v135 = vld [vmem:[%s2 + $0xc8] sm:$0xff]
    %v136 = vld [vmem:[%s2 + $0xd0] sm:$0xff]
    %v137 = vld [vmem:[%s2 + $0xd8] sm:$0xff]
    %v138 = vld [vmem:[%s2 + $0xe0] sm:$0xff]
    %v139 = vld [vmem:[%s2 + $0xe8] sm:$0xff]
    %v140 = vld [vmem:[%s2 + $0xf0] sm:$0xff]
    %v141 = vld [vmem:[%s2 + $0xf8] sm:$0xff]
    %v142 = vld [vmem:[%s2 + $0x100] sm:$0xff]
    %v143 = vld [vmem:[%s2 + $0x108] sm:$0xff]
    %v144 = vld [vmem:[%s2 + $0x110] sm:$0xff]
    %v145 = vld [vmem:[%s2 + $0x118] sm:$0xff]
    %v146 = vld [vmem:[%s2 + $0x120] sm:$0xff]
    %v147 = vld [vmem:[%s2 + $0x128] sm:$0xff]
    %v148 = vld [vmem:[%s2 + $0x130] sm:$0xff]
    %v149 = vld [vmem:[%s2 + $0x138] sm:$0xff]
    %v150 = vld [vmem:[%s2 + $0x140] sm:$0xff]
    %v151 = vld [vmem:[%s2 + $0x148] sm:$0xff]
    %v152 = vld [vmem:[%s2 + $0x150] sm:$0xff]
    %v153 = vld [vmem:[%s2 + $0x158] sm:$0xff]
    %v154 = vld [vmem:[%s2 + $0x160] sm:$0xff]
    %v155 = vld [vmem:[%s2 + $0x168] sm:$0xff]
    %v156 = vld [vmem:[%s2 + $0x170] sm:$0xff]
    %v157 = vld [vmem:[%s2 + $0x178] sm:$0xff]
    %v158 = vld [vmem:[%s2 + $0x180] sm:$0xff]
    %v159 = vld [vmem:[%s2 + $0x188] sm:$0xff]
    %v160 = vld [vmem:[%s2 + $0x190] sm:$0xff]
    %v161 = vld [vmem:[%s2 + $0x198] sm:$0xff]
    %v162 = vld [vmem:[%s2 + $0x1a0] sm:$0xff]
    %v163 = vld [vmem:[%s2 + $0x1a8] sm:$0xff]
    %v164 = vld [vmem:[%s2 + $0x1b0] sm:$0xff]
    %v165 = vld [vmem:[%s2 + $0x1b8] sm:$0xff]
    %v166 = vld [vmem:[%s2 + $0x1c0] sm:$0xff]
    %v167 = vld [vmem:[%s2 + $0x1c8] sm:$0xff]
    %v168 = vld [vmem:[%s2 + $0x1d0] sm:$0xff]
    %v169 = vld [vmem:[%s2 + $0x1d8] sm:$0xff]
    %v170 = vld [vmem:[%s2 + $0x1e0] sm:$0xff]
    %v171 = vld [vmem:[%s2 + $0x1e8] sm:$0xff]
    %v172 = vld [vmem:[%s2 + $0x1f0] sm:$0xff]
    %v173 = vld [vmem:[%s2 + $0x1f8] sm:$0xff]
    %v174 = vld [vmem:[%s3] sm:$0xf]
    %v176 = vperm.slane %v174, 0
    %v177 = vperm.slane %v174, 1
    %v178 = vperm.slane %v174, 2
    %v179 = vperm.slane %v174, 3
    %v248 = vunpack.c.l.b16 %v110
    %v249 = vunpack.c.h.b16 %v110
    %v250 = vunpack.c.l.b16 %v111
    %v251 = vunpack.c.h.b16 %v111
    %v252 = vunpack.c.l.b16 %v112
    %v253 = vunpack.c.h.b16 %v112
    %v254 = vunpack.c.l.b16 %v113
    %v255 = vunpack.c.h.b16 %v113
    %v256 = vunpack.c.l.b16 %v114
    %v257 = vunpack.c.h.b16 %v114
    %v258 = vunpack.c.l.b16 %v115
    %v259 = vunpack.c.h.b16 %v115
    %v260 = vunpack.c.l.b16 %v116
    %v261 = vunpack.c.h.b16 %v116
    %v262 = vunpack.c.l.b16 %v117
    %v263 = vunpack.c.h.b16 %v117
    %v264 = vunpack.c.l.b16 %v118
    %v265 = vunpack.c.h.b16 %v118
    %v266 = vunpack.c.l.b16 %v119
    %v267 = vunpack.c.h.b16 %v119
    %v268 = vunpack.c.l.b16 %v120
    %v269 = vunpack.c.h.b16 %v120
    %v270 = vunpack.c.l.b16 %v121
    %v271 = vunpack.c.h.b16 %v121
    %v272 = vunpack.c.l.b16 %v122
    %v273 = vunpack.c.h.b16 %v122
    %v274 = vunpack.c.l.b16 %v123
    %v275 = vunpack.c.h.b16 %v123
    %v276 = vunpack.c.l.b16 %v124
    %v277 = vunpack.c.h.b16 %v124
    %v278 = vunpack.c.l.b16 %v125
    %v279 = vunpack.c.h.b16 %v125
    %v280 = vunpack.c.l.b16 %v126
    %v281 = vunpack.c.h.b16 %v126
    %v282 = vunpack.c.l.b16 %v127
    %v283 = vunpack.c.h.b16 %v127
    %v284 = vunpack.c.l.b16 %v128
    %v285 = vunpack.c.h.b16 %v128
    %v286 = vunpack.c.l.b16 %v129
    %v287 = vunpack.c.h.b16 %v129
    %v288 = vunpack.c.l.b16 %v130
    %v289 = vunpack.c.h.b16 %v130
    %v290 = vunpack.c.l.b16 %v131
    %v291 = vunpack.c.h.b16 %v131
    %v292 = vunpack.c.l.b16 %v132
    %v293 = vunpack.c.h.b16 %v132
    %v294 = vunpack.c.l.b16 %v133
    %v295 = vunpack.c.h.b16 %v133
    %v296 = vunpack.c.l.b16 %v134
    %v297 = vunpack.c.h.b16 %v134
    %v298 = vunpack.c.l.b16 %v135
    %v299 = vunpack.c.h.b16 %v135
    %v300 = vunpack.c.l.b16 %v136
    %v301 = vunpack.c.h.b16 %v136
    %v302 = vunpack.c.l.b16 %v137
    %v303 = vunpack.c.h.b16 %v137
    %v304 = vunpack.c.l.b16 %v138
    %v305 = vunpack.c.h.b16 %v138
    %v306 = vunpack.c.l.b16 %v139
    %v307 = vunpack.c.h.b16 %v139
    %v308 = vunpack.c.l.b16 %v140
    %v309 = vunpack.c.h.b16 %v140
    %v310 = vunpack.c.l.b16 %v141
    %v311 = vunpack.c.h.b16 %v141
    %v312 = vunpack.c.l.b16 %v142
    %v313 = vunpack.c.h.b16 %v142
    %v314 = vunpack.c.l.b16 %v143
    %v315 = vunpack.c.h.b16 %v143
    %v316 = vunpack.c.l.b16 %v144
    %v317 = vunpack.c.h.b16 %v144
    %v318 = vunpack.c.l.b16 %v145
    %v319 = vunpack.c.h.b16 %v145
    %v320 = vunpack.c.l.b16 %v146
    %v321 = vunpack.c.h.b16 %v146
    %v322 = vunpack.c.l.b16 %v147
    %v323 = vunpack.c.h.b16 %v147
    %v324 = vunpack.c.l.b16 %v148
    %v325 = vunpack.c.h.b16 %v148
    %v326 = vunpack.c.l.b16 %v149
    %v327 = vunpack.c.h.b16 %v149
    %v328 = vunpack.c.l.b16 %v150
    %v329 = vunpack.c.h.b16 %v150
    %v330 = vunpack.c.l.b16 %v151
    %v331 = vunpack.c.h.b16 %v151
    %v332 = vunpack.c.l.b16 %v152
    %v333 = vunpack.c.h.b16 %v152
    %v334 = vunpack.c.l.b16 %v153
    %v335 = vunpack.c.h.b16 %v153
    %v336 = vunpack.c.l.b16 %v154
    %v337 = vunpack.c.h.b16 %v154
    %v338 = vunpack.c.l.b16 %v155
    %v339 = vunpack.c.h.b16 %v155
    %v340 = vunpack.c.l.b16 %v156
    %v341 = vunpack.c.h.b16 %v156
    %v342 = vunpack.c.l.b16 %v157
    %v343 = vunpack.c.h.b16 %v157
    %v344 = vunpack.c.l.b16 %v158
    %v345 = vunpack.c.h.b16 %v158
    %v346 = vunpack.c.l.b16 %v159
    %v347 = vunpack.c.h.b16 %v159
    %v348 = vunpack.c.l.b16 %v160
    %v349 = vunpack.c.h.b16 %v160
    %v350 = vunpack.c.l.b16 %v161
    %v351 = vunpack.c.h.b16 %v161
    %v352 = vunpack.c.l.b16 %v162
    %v353 = vunpack.c.h.b16 %v162
    %v354 = vunpack.c.l.b16 %v163
    %v355 = vunpack.c.h.b16 %v163
    %v356 = vunpack.c.l.b16 %v164
    %v357 = vunpack.c.h.b16 %v164
    %v358 = vunpack.c.l.b16 %v165
    %v359 = vunpack.c.h.b16 %v165
    %v360 = vunpack.c.l.b16 %v166
    %v361 = vunpack.c.h.b16 %v166
    %v362 = vunpack.c.l.b16 %v167
    %v363 = vunpack.c.h.b16 %v167
    %v364 = vunpack.c.l.b16 %v168
    %v365 = vunpack.c.h.b16 %v168
    %v366 = vunpack.c.l.b16 %v169
    %v367 = vunpack.c.h.b16 %v169
    %v368 = vunpack.c.l.b16 %v170
    %v369 = vunpack.c.h.b16 %v170
    %v370 = vunpack.c.l.b16 %v171
    %v371 = vunpack.c.h.b16 %v171
    %v372 = vunpack.c.l.b16 %v172
    %v373 = vunpack.c.h.b16 %v172
    %v374 = vunpack.c.l.b16 %v173
    %v375 = vunpack.c.h.b16 %v173
    %v376 = vpack.c.b16 %v252, %v248
    %v377 = vpack.c.b16 %v253, %v249
    %v378 = vpack.c.b16 %v254, %v250
    %v379 = vpack.c.b16 %v255, %v251
    %v380 = vpack.c.b16 %v260, %v256
    %v381 = vpack.c.b16 %v261, %v257
    %v382 = vpack.c.b16 %v262, %v258
    %v383 = vpack.c.b16 %v263, %v259
    %v384 = vpack.c.b16 %v268, %v264
    %v385 = vpack.c.b16 %v269, %v265
    %v386 = vpack.c.b16 %v270, %v266
    %v387 = vpack.c.b16 %v271, %v267
    %v388 = vpack.c.b16 %v276, %v272
    %v389 = vpack.c.b16 %v277, %v273
    %v390 = vpack.c.b16 %v278, %v274
    %v391 = vpack.c.b16 %v279, %v275
    %v392 = vpack.c.b16 %v284, %v280
    %v393 = vpack.c.b16 %v285, %v281
    %v394 = vpack.c.b16 %v286, %v282
    %v395 = vpack.c.b16 %v287, %v283
    %v396 = vpack.c.b16 %v292, %v288
    %v397 = vpack.c.b16 %v293, %v289
    %v398 = vpack.c.b16 %v294, %v290
    %v399 = vpack.c.b16 %v295, %v291
    %v400 = vpack.c.b16 %v300, %v296
    %v401 = vpack.c.b16 %v301, %v297
    %v402 = vpack.c.b16 %v302, %v298
    %v403 = vpack.c.b16 %v303, %v299
    %v404 = vpack.c.b16 %v308, %v304
    %v405 = vpack.c.b16 %v309, %v305
    %v406 = vpack.c.b16 %v310, %v306
    %v407 = vpack.c.b16 %v311, %v307
    %v408 = vpack.c.b16 %v316, %v312
    %v409 = vpack.c.b16 %v317, %v313
    %v410 = vpack.c.b16 %v318, %v314
    %v411 = vpack.c.b16 %v319, %v315
    %v412 = vpack.c.b16 %v324, %v320
    %v413 = vpack.c.b16 %v325, %v321
    %v414 = vpack.c.b16 %v326, %v322
    %v415 = vpack.c.b16 %v327, %v323
    %v416 = vpack.c.b16 %v332, %v328
    %v417 = vpack.c.b16 %v333, %v329
    %v418 = vpack.c.b16 %v334, %v330
    %v419 = vpack.c.b16 %v335, %v331
    %v420 = vpack.c.b16 %v340, %v336
    %v421 = vpack.c.b16 %v341, %v337
    %v422 = vpack.c.b16 %v342, %v338
    %v423 = vpack.c.b16 %v343, %v339
    %v424 = vpack.c.b16 %v348, %v344
    %v425 = vpack.c.b16 %v349, %v345
    %v426 = vpack.c.b16 %v350, %v346
    %v427 = vpack.c.b16 %v351, %v347
    %v428 = vpack.c.b16 %v356, %v352
    %v429 = vpack.c.b16 %v357, %v353
    %v430 = vpack.c.b16 %v358, %v354
    %v431 = vpack.c.b16 %v359, %v355
    %v432 = vpack.c.b16 %v364, %v360
    %v433 = vpack.c.b16 %v365, %v361
    %v434 = vpack.c.b16 %v366, %v362
    %v435 = vpack.c.b16 %v367, %v363
    %v436 = vpack.c.b16 %v372, %v368
    %v437 = vpack.c.b16 %v373, %v369
    %v438 = vpack.c.b16 %v374, %v370
    %v439 = vpack.c.b16 %v375, %v371
    %504 = vmatpush.bf16.msra.mxu0 %v404
    %505 = vmatpush.bf16.msra.mxu0 %v400
    %506 = vmatpush.bf16.msra.mxu0 %v396
    %507 = vmatpush.bf16.msra.mxu0 %v392
    %508 = vmatpush.bf16.msra.mxu0 %v388
    %509 = vmatpush.bf16.msra.mxu0 %v384
    %510 = vmatpush.bf16.msra.mxu0 %v380
    %511 = vmatpush.bf16.msra.mxu0 %v376
    %512 = vmatmul.bf16.gmra.mxu0 %v108
    %v513 = vpop.f32.mrf.mxu0
    %v514 = vadd.f32 %v176, %v513
    %v515 = vpop.f32.mrf.mxu0
    %v516 = vadd.f32 %v176, %v515
    %517 = vdwg.mxu0
    %518 = vmatpush.bf16.msra.mxu0 %v436
    %519 = vmatpush.bf16.msra.mxu0 %v432
    %520 = vmatpush.bf16.msra.mxu0 %v428
    %521 = vmatpush.bf16.msra.mxu0 %v424
    %522 = vmatpush.bf16.msra.mxu0 %v420
    %523 = vmatpush.bf16.msra.mxu0 %v416
    %524 = vmatpush.bf16.msra.mxu0 %v412
    %525 = vmatpush.bf16.msra.mxu0 %v408
    %526 = vmatmul.bf16.gmra.mxu0 %v109
    %v527 = vpop.f32.mrf.mxu0
    %v528 = vadd.f32 %v514, %v527
    %v529 = vpop.f32.mrf.mxu0
    %v530 = vadd.f32 %v516, %v529
    %531 = vdwg.mxu0
    %532 = vmatpush.bf16.msra.mxu0 %v405
    %533 = vmatpush.bf16.msra.mxu0 %v401
    %534 = vmatpush.bf16.msra.mxu0 %v397
    %535 = vmatpush.bf16.msra.mxu0 %v393
    %536 = vmatpush.bf16.msra.mxu0 %v389
    %537 = vmatpush.bf16.msra.mxu0 %v385
    %538 = vmatpush.bf16.msra.mxu0 %v381
    %539 = vmatpush.bf16.msra.mxu0 %v377
    %540 = vmatmul.bf16.gmra.mxu0 %v108
    %v541 = vpop.f32.mrf.mxu0
    %v542 = vadd.f32 %v177, %v541
    %v543 = vpop.f32.mrf.mxu0
    %v544 = vadd.f32 %v177, %v543
    %545 = vdwg.mxu0
    %546 = vmatpush.bf16.msra.mxu0 %v437
    %547 = vmatpush.bf16.msra.mxu0 %v433
    %548 = vmatpush.bf16.msra.mxu0 %v429
    %549 = vmatpush.bf16.msra.mxu0 %v425
    %550 = vmatpush.bf16.msra.mxu0 %v421
    %551 = vmatpush.bf16.msra.mxu0 %v417
    %552 = vmatpush.bf16.msra.mxu0 %v413
    %553 = vmatpush.bf16.msra.mxu0 %v409
    %554 = vmatmul.bf16.gmra.mxu0 %v109
    %v555 = vpop.f32.mrf.mxu0
    %v556 = vadd.f32 %v542, %v555
    %v557 = vpop.f32.mrf.mxu0
    %v558 = vadd.f32 %v544, %v557
    %559 = vdwg.mxu0
    %560 = vmatpush.bf16.msra.mxu0 %v406
    %561 = vmatpush.bf16.msra.mxu0 %v402
    %562 = vmatpush.bf16.msra.mxu0 %v398
    %563 = vmatpush.bf16.msra.mxu0 %v394
    %564 = vmatpush.bf16.msra.mxu0 %v390
    %565 = vmatpush.bf16.msra.mxu0 %v386
    %566 = vmatpush.bf16.msra.mxu0 %v382
    %567 = vmatpush.bf16.msra.mxu0 %v378
    %568 = vmatmul.bf16.gmra.mxu0 %v108
    %v569 = vpop.f32.mrf.mxu0
    %v570 = vadd.f32 %v178, %v569
    %v571 = vpop.f32.mrf.mxu0
    %v572 = vadd.f32 %v178, %v571
    %573 = vdwg.mxu0
    %574 = vmatpush.bf16.msra.mxu0 %v438
    %575 = vmatpush.bf16.msra.mxu0 %v434
    %576 = vmatpush.bf16.msra.mxu0 %v430
    %577 = vmatpush.bf16.msra.mxu0 %v426
    %578 = vmatpush.bf16.msra.mxu0 %v422
    %579 = vmatpush.bf16.msra.mxu0 %v418
    %580 = vmatpush.bf16.msra.mxu0 %v414
    %581 = vmatpush.bf16.msra.mxu0 %v410
    %582 = vmatmul.bf16.gmra.mxu0 %v109
    %v583 = vpop.f32.mrf.mxu0
    %v584 = vadd.f32 %v570, %v583
    %v585 = vpop.f32.mrf.mxu0
    %v586 = vadd.f32 %v572, %v585
    %587 = vdwg.mxu0
    %588 = vmatpush.bf16.msra.mxu0 %v407
    %589 = vmatpush.bf16.msra.mxu0 %v403
    %590 = vmatpush.bf16.msra.mxu0 %v399
    %591 = vmatpush.bf16.msra.mxu0 %v395
    %592 = vmatpush.bf16.msra.mxu0 %v391
    %593 = vmatpush.bf16.msra.mxu0 %v387
    %594 = vmatpush.bf16.msra.mxu0 %v383
    %595 = vmatpush.bf16.msra.mxu0 %v379
    %596 = vmatmul.bf16.gmra.mxu0 %v108
    %v597 = vpop.f32.mrf.mxu0
    %v598 = vadd.f32 %v179, %v597
    %v599 = vpop.f32.mrf.mxu0
    %v600 = vadd.f32 %v179, %v599
    %601 = vdwg.mxu0
    %602 = vmatpush.bf16.msra.mxu0 %v439
    %603 = vmatpush.bf16.msra.mxu0 %v435
    %604 = vmatpush.bf16.msra.mxu0 %v431
    %605 = vmatpush.bf16.msra.mxu0 %v427
    %606 = vmatpush.bf16.msra.mxu0 %v423
    %607 = vmatpush.bf16.msra.mxu0 %v419
    %608 = vmatpush.bf16.msra.mxu0 %v415
    %609 = vmatpush.bf16.msra.mxu0 %v411
    %610 = vmatmul.bf16.gmra.mxu0 %v109
    %v611 = vpop.f32.mrf.mxu0
    %v612 = vadd.f32 %v598, %v611
    %v613 = vpop.f32.mrf.mxu0
    %v614 = vadd.f32 %v600, %v613
    %615 = vdwg.mxu0
    %v616 = vmax.f32 %v528, 0.0
    %v617 = vmax.f32 %v556, 0.0
    %v618 = vmax.f32 %v584, 0.0
    %v619 = vmax.f32 %v612, 0.0
    %v620 = vmax.f32 %v530, 0.0
    %v621 = vmax.f32 %v558, 0.0
    %v622 = vmax.f32 %v586, 0.0
    %v623 = vmax.f32 %v614, 0.0
    %v624 = vpack.c.bf16 %v617, %v616
    %v625 = vpack.c.bf16 %v619, %v618
    %v626 = vpack.c.bf16 %v621, %v620
    %v627 = vpack.c.bf16 %v623, %v622
    %v628 = vld [vmem:[%s4] sm:$0xff]
    %v629 = vld [vmem:[%s4 + $0x8] sm:$0xff]
    %v630 = vld [vmem:[%s4 + $0x10] sm:$0xff]
    %v631 = vld [vmem:[%s4 + $0x18] sm:$0xff]
    %v632 = vld [vmem:[%s4 + $0x20] sm:$0xff]
    %v633 = vld [vmem:[%s4 + $0x28] sm:$0xff]
    %v634 = vld [vmem:[%s4 + $0x30] sm:$0xff]
    %v635 = vld [vmem:[%s4 + $0x38] sm:$0xff]
    %v636 = vld [vmem:[%s4 + $0x40] sm:$0xff]
    %v637 = vld [vmem:[%s4 + $0x48] sm:$0xff]
    %v638 = vld [vmem:[%s4 + $0x50] sm:$0xff]
    %v639 = vld [vmem:[%s4 + $0x58] sm:$0xff]
    %v640 = vld [vmem:[%s4 + $0x60] sm:$0xff]
    %v641 = vld [vmem:[%s4 + $0x68] sm:$0xff]
    %v642 = vld [vmem:[%s4 + $0x70] sm:$0xff]
    %v643 = vld [vmem:[%s4 + $0x78] sm:$0xff]
    %v644 = vld [vmem:[%s4 + $0x80] sm:$0xff]
    %v645 = vld [vmem:[%s4 + $0x88] sm:$0xff]
    %v646 = vld [vmem:[%s4 + $0x90] sm:$0xff]
    %v647 = vld [vmem:[%s4 + $0x98] sm:$0xff]
    %v648 = vld [vmem:[%s4 + $0xa0] sm:$0xff]
    %v649 = vld [vmem:[%s4 + $0xa8] sm:$0xff]
    %v650 = vld [vmem:[%s4 + $0xb0] sm:$0xff]
    %v651 = vld [vmem:[%s4 + $0xb8] sm:$0xff]
    %v652 = vld [vmem:[%s4 + $0xc0] sm:$0xff]
    %v653 = vld [vmem:[%s4 + $0xc8] sm:$0xff]
    %v654 = vld [vmem:[%s4 + $0xd0] sm:$0xff]
    %v655 = vld [vmem:[%s4 + $0xd8] sm:$0xff]
    %v656 = vld [vmem:[%s4 + $0xe0] sm:$0xff]
    %v657 = vld [vmem:[%s4 + $0xe8] sm:$0xff]
    %v658 = vld [vmem:[%s4 + $0xf0] sm:$0xff]
    %v659 = vld [vmem:[%s4 + $0xf8] sm:$0xff]
    %v660 = vld [vmem:[%s4 + $0x100] sm:$0xff]
    %v661 = vld [vmem:[%s4 + $0x108] sm:$0xff]
    %v662 = vld [vmem:[%s4 + $0x110] sm:$0xff]
    %v663 = vld [vmem:[%s4 + $0x118] sm:$0xff]
    %v664 = vld [vmem:[%s4 + $0x120] sm:$0xff]
    %v665 = vld [vmem:[%s4 + $0x128] sm:$0xff]
    %v666 = vld [vmem:[%s4 + $0x130] sm:$0xff]
    %v667 = vld [vmem:[%s4 + $0x138] sm:$0xff]
    %v668 = vld [vmem:[%s4 + $0x140] sm:$0xff]
    %v669 = vld [vmem:[%s4 + $0x148] sm:$0xff]
    %v670 = vld [vmem:[%s4 + $0x150] sm:$0xff]
    %v671 = vld [vmem:[%s4 + $0x158] sm:$0xff]
    %v672 = vld [vmem:[%s4 + $0x160] sm:$0xff]
    %v673 = vld [vmem:[%s4 + $0x168] sm:$0xff]
    %v674 = vld [vmem:[%s4 + $0x170] sm:$0xff]
    %v675 = vld [vmem:[%s4 + $0x178] sm:$0xff]
    %v676 = vld [vmem:[%s4 + $0x180] sm:$0xff]
    %v677 = vld [vmem:[%s4 + $0x188] sm:$0xff]
    %v678 = vld [vmem:[%s4 + $0x190] sm:$0xff]
    %v679 = vld [vmem:[%s4 + $0x198] sm:$0xff]
    %v680 = vld [vmem:[%s4 + $0x1a0] sm:$0xff]
    %v681 = vld [vmem:[%s4 + $0x1a8] sm:$0xff]
    %v682 = vld [vmem:[%s4 + $0x1b0] sm:$0xff]
    %v683 = vld [vmem:[%s4 + $0x1b8] sm:$0xff]
    %v684 = vld [vmem:[%s4 + $0x1c0] sm:$0xff]
    %v685 = vld [vmem:[%s4 + $0x1c8] sm:$0xff]
    %v686 = vld [vmem:[%s4 + $0x1d0] sm:$0xff]
    %v687 = vld [vmem:[%s4 + $0x1d8] sm:$0xff]
    %v688 = vld [vmem:[%s4 + $0x1e0] sm:$0xff]
    %v689 = vld [vmem:[%s4 + $0x1e8] sm:$0xff]
    %v690 = vld [vmem:[%s4 + $0x1f0] sm:$0xff]
    %v691 = vld [vmem:[%s4 + $0x1f8] sm:$0xff]
    %v692 = vld [vmem:[%s5] sm:$0x3]
    %v694 = vperm.slane %v692, 0
    %v695 = vperm.slane %v692, 1
    %v702 = vunpack.c.l.b16 %v624
    %v703 = vunpack.c.h.b16 %v624
    %v704 = vunpack.c.l.b16 %v625
    %v705 = vunpack.c.h.b16 %v625
    %v706 = vunpack.c.l.b16 %v626
    %v707 = vunpack.c.h.b16 %v626
    %v708 = vunpack.c.l.b16 %v627
    %v709 = vunpack.c.h.b16 %v627
    %v710 = vpack.c.b16 %v706, %v702
    %v711 = vpack.c.b16 %v707, %v703
    %v712 = vpack.c.b16 %v708, %v704
    %v713 = vpack.c.b16 %v709, %v705
    %v782 = vunpack.c.l.b16 %v628
    %v783 = vunpack.c.h.b16 %v628
    %v784 = vunpack.c.l.b16 %v629
    %v785 = vunpack.c.h.b16 %v629
    %v786 = vunpack.c.l.b16 %v630
    %v787 = vunpack.c.h.b16 %v630
    %v788 = vunpack.c.l.b16 %v631
    %v789 = vunpack.c.h.b16 %v631
    %v790 = vunpack.c.l.b16 %v632
    %v791 = vunpack.c.h.b16 %v632
    %v792 = vunpack.c.l.b16 %v633
    %v793 = vunpack.c.h.b16 %v633
    %v794 = vunpack.c.l.b16 %v634
    %v795 = vunpack.c.h.b16 %v634
    %v796 = vunpack.c.l.b16 %v635
    %v797 = vunpack.c.h.b16 %v635
    %v798 = vunpack.c.l.b16 %v636
    %v799 = vunpack.c.h.b16 %v636
    %v800 = vunpack.c.l.b16 %v637
    %v801 = vunpack.c.h.b16 %v637
    %v802 = vunpack.c.l.b16 %v638
    %v803 = vunpack.c.h.b16 %v638
    %v804 = vunpack.c.l.b16 %v639
    %v805 = vunpack.c.h.b16 %v639
    %v806 = vunpack.c.l.b16 %v640
    %v807 = vunpack.c.h.b16 %v640
    %v808 = vunpack.c.l.b16 %v641
    %v809 = vunpack.c.h.b16 %v641
    %v810 = vunpack.c.l.b16 %v642
    %v811 = vunpack.c.h.b16 %v642
    %v812 = vunpack.c.l.b16 %v643
    %v813 = vunpack.c.h.b16 %v643
    %v814 = vunpack.c.l.b16 %v644
    %v815 = vunpack.c.h.b16 %v644
    %v816 = vunpack.c.l.b16 %v645
    %v817 = vunpack.c.h.b16 %v645
    %v818 = vunpack.c.l.b16 %v646
    %v819 = vunpack.c.h.b16 %v646
    %v820 = vunpack.c.l.b16 %v647
    %v821 = vunpack.c.h.b16 %v647
    %v822 = vunpack.c.l.b16 %v648
    %v823 = vunpack.c.h.b16 %v648
    %v824 = vunpack.c.l.b16 %v649
    %v825 = vunpack.c.h.b16 %v649
    %v826 = vunpack.c.l.b16 %v650
    %v827 = vunpack.c.h.b16 %v650
    %v828 = vunpack.c.l.b16 %v651
    %v829 = vunpack.c.h.b16 %v651
    %v830 = vunpack.c.l.b16 %v652
    %v831 = vunpack.c.h.b16 %v652
    %v832 = vunpack.c.l.b16 %v653
    %v833 = vunpack.c.h.b16 %v653
    %v834 = vunpack.c.l.b16 %v654
    %v835 = vunpack.c.h.b16 %v654
    %v836 = vunpack.c.l.b16 %v655
    %v837 = vunpack.c.h.b16 %v655
    %v838 = vunpack.c.l.b16 %v656
    %v839 = vunpack.c.h.b16 %v656
    %v840 = vunpack.c.l.b16 %v657
    %v841 = vunpack.c.h.b16 %v657
    %v842 = vunpack.c.l.b16 %v658
    %v843 = vunpack.c.h.b16 %v658
    %v844 = vunpack.c.l.b16 %v659
    %v845 = vunpack.c.h.b16 %v659
    %v846 = vunpack.c.l.b16 %v660
    %v847 = vunpack.c.h.b16 %v660
    %v848 = vunpack.c.l.b16 %v661
    %v849 = vunpack.c.h.b16 %v661
    %v850 = vunpack.c.l.b16 %v662
    %v851 = vunpack.c.h.b16 %v662
    %v852 = vunpack.c.l.b16 %v663
    %v853 = vunpack.c.h.b16 %v663
    %v854 = vunpack.c.l.b16 %v664
    %v855 = vunpack.c.h.b16 %v664
    %v856 = vunpack.c.l.b16 %v665
    %v857 = vunpack.c.h.b16 %v665
    %v858 = vunpack.c.l.b16 %v666
    %v859 = vunpack.c.h.b16 %v666
    %v860 = vunpack.c.l.b16 %v667
    %v861 = vunpack.c.h.b16 %v667
    %v862 = vunpack.c.l.b16 %v668
    %v863 = vunpack.c.h.b16 %v668
    %v864 = vunpack.c.l.b16 %v669
    %v865 = vunpack.c.h.b16 %v669
    %v866 = vunpack.c.l.b16 %v670
    %v867 = vunpack.c.h.b16 %v670
    %v868 = vunpack.c.l.b16 %v671
    %v869 = vunpack.c.h.b16 %v671
    %v870 = vunpack.c.l.b16 %v672
    %v871 = vunpack.c.h.b16 %v672
    %v872 = vunpack.c.l.b16 %v673
    %v873 = vunpack.c.h.b16 %v673
    %v874 = vunpack.c.l.b16 %v674
    %v875 = vunpack.c.h.b16 %v674
    %v876 = vunpack.c.l.b16 %v675
    %v877 = vunpack.c.h.b16 %v675
    %v878 = vunpack.c.l.b16 %v676
    %v879 = vunpack.c.h.b16 %v676
    %v880 = vunpack.c.l.b16 %v677
    %v881 = vunpack.c.h.b16 %v677
    %v882 = vunpack.c.l.b16 %v678
    %v883 = vunpack.c.h.b16 %v678
    %v884 = vunpack.c.l.b16 %v679
    %v885 = vunpack.c.h.b16 %v679
    %v886 = vunpack.c.l.b16 %v680
    %v887 = vunpack.c.h.b16 %v680
    %v888 = vunpack.c.l.b16 %v681
    %v889 = vunpack.c.h.b16 %v681
    %v890 = vunpack.c.l.b16 %v682
    %v891 = vunpack.c.h.b16 %v682
    %v892 = vunpack.c.l.b16 %v683
    %v893 = vunpack.c.h.b16 %v683
    %v894 = vunpack.c.l.b16 %v684
    %v895 = vunpack.c.h.b16 %v684
    %v896 = vunpack.c.l.b16 %v685
    %v897 = vunpack.c.h.b16 %v685
    %v898 = vunpack.c.l.b16 %v686
    %v899 = vunpack.c.h.b16 %v686
    %v900 = vunpack.c.l.b16 %v687
    %v901 = vunpack.c.h.b16 %v687
    %v902 = vunpack.c.l.b16 %v688
    %v903 = vunpack.c.h.b16 %v688
    %v904 = vunpack.c.l.b16 %v689
    %v905 = vunpack.c.h.b16 %v689
    %v906 = vunpack.c.l.b16 %v690
    %v907 = vunpack.c.h.b16 %v690
    %v908 = vunpack.c.l.b16 %v691
    %v909 = vunpack.c.h.b16 %v691
    %v910 = vpack.c.b16 %v784, %v782
    %v911 = vpack.c.b16 %v785, %v783
    %v912 = vpack.c.b16 %v788, %v786
    %v913 = vpack.c.b16 %v789, %v787
    %v914 = vpack.c.b16 %v792, %v790
    %v915 = vpack.c.b16 %v793, %v791
    %v916 = vpack.c.b16 %v796, %v794
    %v917 = vpack.c.b16 %v797, %v795
    %v918 = vpack.c.b16 %v800, %v798
    %v919 = vpack.c.b16 %v801, %v799
    %v920 = vpack.c.b16 %v804, %v802
    %v921 = vpack.c.b16 %v805, %v803
    %v922 = vpack.c.b16 %v808, %v806
    %v923 = vpack.c.b16 %v809, %v807
    %v924 = vpack.c.b16 %v812, %v810
    %v925 = vpack.c.b16 %v813, %v811
    %v926 = vpack.c.b16 %v816, %v814
    %v927 = vpack.c.b16 %v817, %v815
    %v928 = vpack.c.b16 %v820, %v818
    %v929 = vpack.c.b16 %v821, %v819
    %v930 = vpack.c.b16 %v824, %v822
    %v931 = vpack.c.b16 %v825, %v823
    %v932 = vpack.c.b16 %v828, %v826
    %v933 = vpack.c.b16 %v829, %v827
    %v934 = vpack.c.b16 %v832, %v830
    %v935 = vpack.c.b16 %v833, %v831
    %v936 = vpack.c.b16 %v836, %v834
    %v937 = vpack.c.b16 %v837, %v835
    %v938 = vpack.c.b16 %v840, %v838
    %v939 = vpack.c.b16 %v841, %v839
    %v940 = vpack.c.b16 %v844, %v842
    %v941 = vpack.c.b16 %v845, %v843
    %v942 = vpack.c.b16 %v848, %v846
    %v943 = vpack.c.b16 %v849, %v847
    %v944 = vpack.c.b16 %v852, %v850
    %v945 = vpack.c.b16 %v853, %v851
    %v946 = vpack.c.b16 %v856, %v854
    %v947 = vpack.c.b16 %v857, %v855
    %v948 = vpack.c.b16 %v860, %v858
    %v949 = vpack.c.b16 %v861, %v859
    %v950 = vpack.c.b16 %v864, %v862
    %v951 = vpack.c.b16 %v865, %v863
    %v952 = vpack.c.b16 %v868, %v866
    %v953 = vpack.c.b16 %v869, %v867
    %v954 = vpack.c.b16 %v872, %v870
    %v955 = vpack.c.b16 %v873, %v871
    %v956 = vpack.c.b16 %v876, %v874
    %v957 = vpack.c.b16 %v877, %v875
    %v958 = vpack.c.b16 %v880, %v878
    %v959 = vpack.c.b16 %v881, %v879
    %v960 = vpack.c.b16 %v884, %v882
    %v961 = vpack.c.b16 %v885, %v883
    %v962 = vpack.c.b16 %v888, %v886
    %v963 = vpack.c.b16 %v889, %v887
    %v964 = vpack.c.b16 %v892, %v890
    %v965 = vpack.c.b16 %v893, %v891
    %v966 = vpack.c.b16 %v896, %v894
    %v967 = vpack.c.b16 %v897, %v895
    %v968 = vpack.c.b16 %v900, %v898
    %v969 = vpack.c.b16 %v901, %v899
    %v970 = vpack.c.b16 %v904, %v902
    %v971 = vpack.c.b16 %v905, %v903
    %v972 = vpack.c.b16 %v908, %v906
    %v973 = vpack.c.b16 %v909, %v907
    %1038 = vmatpush.bf16.msra.mxu0 %v924
    %1039 = vmatpush.bf16.msra.mxu0 %v922
    %1040 = vmatpush.bf16.msra.mxu0 %v920
    %1041 = vmatpush.bf16.msra.mxu0 %v918
    %1042 = vmatpush.bf16.msra.mxu0 %v916
    %1043 = vmatpush.bf16.msra.mxu0 %v914
    %1044 = vmatpush.bf16.msra.mxu0 %v912
    %1045 = vmatpush.bf16.msra.mxu0 %v910
    %1046 = vmatmul.bf16.gmra.mxu0 %v710
    %v1047 = vpop.f32.mrf.mxu0
    %v1048 = vadd.f32 %v694, %v1047
    %v1049 = vpop.f32.mrf.mxu0
    %v1050 = vadd.f32 %v694, %v1049
    %1051 = vdwg.mxu0
    %1052 = vmatpush.bf16.msra.mxu0 %v940
    %1053 = vmatpush.bf16.msra.mxu0 %v938
    %1054 = vmatpush.bf16.msra.mxu0 %v936
    %1055 = vmatpush.bf16.msra.mxu0 %v934
    %1056 = vmatpush.bf16.msra.mxu0 %v932
    %1057 = vmatpush.bf16.msra.mxu0 %v930
    %1058 = vmatpush.bf16.msra.mxu0 %v928
    %1059 = vmatpush.bf16.msra.mxu0 %v926
    %1060 = vmatmul.bf16.gmra.mxu0 %v711
    %v1061 = vpop.f32.mrf.mxu0
    %v1062 = vadd.f32 %v1048, %v1061
    %v1063 = vpop.f32.mrf.mxu0
    %v1064 = vadd.f32 %v1050, %v1063
    %1065 = vdwg.mxu0
    %1066 = vmatpush.bf16.msra.mxu0 %v956
    %1067 = vmatpush.bf16.msra.mxu0 %v954
    %1068 = vmatpush.bf16.msra.mxu0 %v952
    %1069 = vmatpush.bf16.msra.mxu0 %v950
    %1070 = vmatpush.bf16.msra.mxu0 %v948
    %1071 = vmatpush.bf16.msra.mxu0 %v946
    %1072 = vmatpush.bf16.msra.mxu0 %v944
    %1073 = vmatpush.bf16.msra.mxu0 %v942
    %1074 = vmatmul.bf16.gmra.mxu0 %v712
    %v1075 = vpop.f32.mrf.mxu0
    %v1076 = vadd.f32 %v1062, %v1075
    %v1077 = vpop.f32.mrf.mxu0
    %v1078 = vadd.f32 %v1064, %v1077
    %1079 = vdwg.mxu0
    %1080 = vmatpush.bf16.msra.mxu0 %v972
    %1081 = vmatpush.bf16.msra.mxu0 %v970
    %1082 = vmatpush.bf16.msra.mxu0 %v968
    %1083 = vmatpush.bf16.msra.mxu0 %v966
    %1084 = vmatpush.bf16.msra.mxu0 %v964
    %1085 = vmatpush.bf16.msra.mxu0 %v962
    %1086 = vmatpush.bf16.msra.mxu0 %v960
    %1087 = vmatpush.bf16.msra.mxu0 %v958
    %1088 = vmatmul.bf16.gmra.mxu0 %v713
    %v1089 = vpop.f32.mrf.mxu0
    %v1090 = vadd.f32 %v1076, %v1089
    %v1091 = vpop.f32.mrf.mxu0
    %v1092 = vadd.f32 %v1078, %v1091
    %1093 = vdwg.mxu0
    %1094 = vmatpush.bf16.msra.mxu0 %v925
    %1095 = vmatpush.bf16.msra.mxu0 %v923
    %1096 = vmatpush.bf16.msra.mxu0 %v921
    %1097 = vmatpush.bf16.msra.mxu0 %v919
    %1098 = vmatpush.bf16.msra.mxu0 %v917
    %1099 = vmatpush.bf16.msra.mxu0 %v915
    %1100 = vmatpush.bf16.msra.mxu0 %v913
    %1101 = vmatpush.bf16.msra.mxu0 %v911
    %1102 = vmatmul.bf16.gmra.mxu0 %v710
    %v1103 = vpop.f32.mrf.mxu0
    %v1104 = vadd.f32 %v695, %v1103
    %v1105 = vpop.f32.mrf.mxu0
    %v1106 = vadd.f32 %v695, %v1105
    %1107 = vdwg.mxu0
    %1108 = vmatpush.bf16.msra.mxu0 %v941
    %1109 = vmatpush.bf16.msra.mxu0 %v939
    %1110 = vmatpush.bf16.msra.mxu0 %v937
    %1111 = vmatpush.bf16.msra.mxu0 %v935
    %1112 = vmatpush.bf16.msra.mxu0 %v933
    %1113 = vmatpush.bf16.msra.mxu0 %v931
    %1114 = vmatpush.bf16.msra.mxu0 %v929
    %1115 = vmatpush.bf16.msra.mxu0 %v927
    %1116 = vmatmul.bf16.gmra.mxu0 %v711
    %v1117 = vpop.f32.mrf.mxu0
    %v1118 = vadd.f32 %v1104, %v1117
    %v1119 = vpop.f32.mrf.mxu0
    %v1120 = vadd.f32 %v1106, %v1119
    %1121 = vdwg.mxu0
    %1122 = vmatpush.bf16.msra.mxu0 %v957
    %1123 = vmatpush.bf16.msra.mxu0 %v955
    %1124 = vmatpush.bf16.msra.mxu0 %v953
    %1125 = vmatpush.bf16.msra.mxu0 %v951
    %1126 = vmatpush.bf16.msra.mxu0 %v949
    %1127 = vmatpush.bf16.msra.mxu0 %v947
    %1128 = vmatpush.bf16.msra.mxu0 %v945
    %1129 = vmatpush.bf16.msra.mxu0 %v943
    %1130 = vmatmul.bf16.gmra.mxu0 %v712
    %v1131 = vpop.f32.mrf.mxu0
    %v1132 = vadd.f32 %v1118, %v1131
    %v1133 = vpop.f32.mrf.mxu0
    %v1134 = vadd.f32 %v1120, %v1133
    %1135 = vdwg.mxu0
    %1136 = vmatpush.bf16.msra.mxu0 %v973
    %1137 = vmatpush.bf16.msra.mxu0 %v971
    %1138 = vmatpush.bf16.msra.mxu0 %v969
    %1139 = vmatpush.bf16.msra.mxu0 %v967
    %1140 = vmatpush.bf16.msra.mxu0 %v965
    %1141 = vmatpush.bf16.msra.mxu0 %v963
    %1142 = vmatpush.bf16.msra.mxu0 %v961
    %1143 = vmatpush.bf16.msra.mxu0 %v959
    %1144 = vmatmul.bf16.gmra.mxu0 %v713
    %v1145 = vpop.f32.mrf.mxu0
    %v1146 = vadd.f32 %v1132, %v1145
    %v1147 = vpop.f32.mrf.mxu0
    %v1148 = vadd.f32 %v1134, %v1147
    %1149 = vdwg.mxu0
    %v1150 = vtanh.pop %v1090
    %v1151 = vtanh.pop %v1146
    %v1152 = vtanh.pop %v1092
    %v1153 = vtanh.pop %v1148
    %v1154 = vld [vmem:[%s6] sm:$0x3]
    %v1156 = vperm.slane %v1154, 0
    %v1157 = vperm.slane %v1154, 1
    %v1160 = vmul.f32 %v1150, %v1156
    %v1161 = vmul.f32 %v1151, %v1157
    %v1162 = vmul.f32 %v1152, %v1156
    %v1163 = vmul.f32 %v1153, %v1157
    %v1164 = vadd.f32 %v1160, %v1161
    %1165 = vadd.xlane.f32.xlu0 %v1164
    %v1166 = vpop.xlane.xlu0 %1165
    %v1167 = vadd.f32 %v1162, %v1163
    %1168 = vadd.xlane.f32.xlu0 %v1167
    %v1169 = vpop.xlane.xlu0 %1168
    %v1170 = vld [vmem:[#allocation7] sm:$0x1]
    %v1172 = vperm.slane %v1170, 0
    %v1174 = vadd.f32 %v1166, %v1172
    %v1175 = vadd.f32 %v1169, %v1172
    %v1176 = vsel %vm94, %v1174, -1e+30
    %v1177 = vsel %vm95, %v1175, -1e+30
    %v1178 = vld [vmem:[#allocation2] sm:$0x1]
    %vm1179 = vcmask 7168
    %v1180 = vsel %vm1179, %v1176, -inf
    %v1181 = vsel %vm1179, %v1177, -inf
    %v1182 = vmax.f32 %v1180, %v1181
    %v1183 = vrot.slane %v1182, 4
    %v1184 = vmax.f32 %v1182, %v1183
    %v1185 = vrot.slane %v1184, 2
    %v1186 = vmax.f32 %v1184, %v1185
    %v1187 = vrot.slane %v1186, 1
    %v1188 = vmax.f32 %v1186, %v1187
    %v1189 = vmax.f32 %v1178, %v1188
    %v1190 = vsub.f32 %v1178, %v1189
    %v1191 = vmul.f32 %v1190, 1.442695
    %v1192 = vpow.pop %v1191
    %v1194 = vperm.slane %v1189, 0
    %v1196 = vsub.f32 %v1176, %v1194
    %v1197 = vsub.f32 %v1177, %v1194
    %v1198 = vmul.f32 %v1196, 1.442695
    %v1199 = vpow.pop %v1198
    %v1200 = vmul.f32 %v1197, 1.442695
    %v1201 = vpow.pop %v1200
    %v1202 = vld [vmem:[#allocation3] sm:$0x1]
    %v1203 = vmul.f32 %v1192, %v1202
    %v1204 = vsel %vm1179, %v1199, 0.0
    %v1205 = vsel %vm1179, %v1201, 0.0
    %v1206 = vadd.f32 %v1204, %v1205
    %v1207 = vrot.slane %v1206, 4
    %v1208 = vadd.f32 %v1206, %v1207
    %v1209 = vrot.slane %v1208, 2
    %v1210 = vadd.f32 %v1208, %v1209
    %v1211 = vrot.slane %v1210, 1
    %v1212 = vadd.f32 %v1210, %v1211
    %v1213 = vadd.f32 %v1203, %v1212
    %vm1214 = vcmask 0
    %1215 = vst.msk [vmem:[#allocation3] sm:$0x1] %vm1214, %v1213
    %v1216 = vpack.c.bf16 %v1199, %v1199
    %v1217 = vpack.c.bf16 %v1201, %v1201
    %1219 = vset.pattern.permute.xlu0 0
    %1220 = vperm.xlu0 %1219, %v1216
    %v1221 = vpop.permute.xlu0 %1220
    %v1224 = vunpack.c.l.s4 839922192
    %v1225 = vunpack.c.0.s8 %v1224
    %v1226 = vperm.slane %v1221, %v1225
    %1228 = vset.pattern.permute.xlu0 0
    %1229 = vperm.xlu0 %1228, %v1217
    %v1230 = vpop.permute.xlu0 %1229
    %v1233 = vunpack.c.l.s4 839922192
    %v1234 = vunpack.c.0.s8 %v1233
    %v1235 = vperm.slane %v1230, %v1234
    %v1236 = vunpack.c.l.bf16 %v1226
    %v1237 = vunpack.c.l.bf16 %v1235
    %v1238 = vunpack.c.l.bf16 %v624
    %v1239 = vunpack.c.h.bf16 %v624
    %v1240 = vunpack.c.l.bf16 %v625
    %v1241 = vunpack.c.h.bf16 %v625
    %v1242 = vunpack.c.l.bf16 %v626
    %v1243 = vunpack.c.h.bf16 %v626
    %v1244 = vunpack.c.l.bf16 %v627
    %v1245 = vunpack.c.h.bf16 %v627
    %v1246 = vmul.f32 %v1236, %v1238
    %v1247 = vmul.f32 %v1236, %v1239
    %v1248 = vmul.f32 %v1236, %v1240
    %v1249 = vmul.f32 %v1236, %v1241
    %v1250 = vmul.f32 %v1237, %v1242
    %v1251 = vmul.f32 %v1237, %v1243
    %v1252 = vmul.f32 %v1237, %v1244
    %v1253 = vmul.f32 %v1237, %v1245
    %v1254 = vpack.c.bf16 %v1250, %v1246
    %v1255 = vpack.c.bf16 %v1251, %v1247
    %v1256 = vpack.c.bf16 %v1252, %v1248
    %v1257 = vpack.c.bf16 %v1253, %v1249
    %vm1258 = vcmask 130048
    %v1260 = vsel %vm1258, 1065369472, 0
    %1262 = vmatpush.bf16.msra.mxu0 0
    %1263 = vmatpush.bf16.msra.mxu0 0
    %1264 = vmatpush.bf16.msra.mxu0 0
    %1265 = vmatpush.bf16.msra.mxu0 0
    %1266 = vmatpush.bf16.msra.mxu0 0
    %1267 = vmatpush.bf16.msra.mxu0 0
    %1268 = vmatpush.bf16.msra.mxu0 0
    %1269 = vmatpush.bf16.msra.mxu0 %v1254
    %1270 = vmatmul.bf16.gmra.mxu0 %v1260
    %v1271 = vpop.f32.mrf.mxu0
    %v1272 = vadd.f32 0.0, %v1271
    %v1273 = vpop.f32.mrf.mxu0
    %1274 = vdwg.mxu0
    %1275 = vmatpush.bf16.msra.mxu0 0
    %1276 = vmatpush.bf16.msra.mxu0 0
    %1277 = vmatpush.bf16.msra.mxu0 0
    %1278 = vmatpush.bf16.msra.mxu0 0
    %1279 = vmatpush.bf16.msra.mxu0 0
    %1280 = vmatpush.bf16.msra.mxu0 0
    %1281 = vmatpush.bf16.msra.mxu0 0
    %1282 = vmatpush.bf16.msra.mxu0 %v1255
    %1283 = vmatmul.bf16.gmra.mxu0 %v1260
    %v1284 = vpop.f32.mrf.mxu0
    %v1285 = vadd.f32 0.0, %v1284
    %v1286 = vpop.f32.mrf.mxu0
    %1287 = vdwg.mxu0
    %1288 = vmatpush.bf16.msra.mxu0 0
    %1289 = vmatpush.bf16.msra.mxu0 0
    %1290 = vmatpush.bf16.msra.mxu0 0
    %1291 = vmatpush.bf16.msra.mxu0 0
    %1292 = vmatpush.bf16.msra.mxu0 0
    %1293 = vmatpush.bf16.msra.mxu0 0
    %1294 = vmatpush.bf16.msra.mxu0 0
    %1295 = vmatpush.bf16.msra.mxu0 %v1256
    %1296 = vmatmul.bf16.gmra.mxu0 %v1260
    %v1297 = vpop.f32.mrf.mxu0
    %v1298 = vadd.f32 0.0, %v1297
    %v1299 = vpop.f32.mrf.mxu0
    %1300 = vdwg.mxu0
    %1301 = vmatpush.bf16.msra.mxu0 0
    %1302 = vmatpush.bf16.msra.mxu0 0
    %1303 = vmatpush.bf16.msra.mxu0 0
    %1304 = vmatpush.bf16.msra.mxu0 0
    %1305 = vmatpush.bf16.msra.mxu0 0
    %1306 = vmatpush.bf16.msra.mxu0 0
    %1307 = vmatpush.bf16.msra.mxu0 0
    %1308 = vmatpush.bf16.msra.mxu0 %v1257
    %1309 = vmatmul.bf16.gmra.mxu0 %v1260
    %v1310 = vpop.f32.mrf.mxu0
    %v1311 = vadd.f32 0.0, %v1310
    %v1312 = vpop.f32.mrf.mxu0
    %1313 = vdwg.mxu0
    %v1314 = vld [vmem:[#allocation4] sm:$0xf]
    %1316 = vset.pattern.permute.xlu0 0
    %1317 = vperm.xlu0 %1316, %v1192
    %v1318 = vpop.permute.xlu0 %1317
    %v1320 = vperm.slane %v1318, 0
    %v1321 = vmul.f32 %v1320, %v1314
    %v1326 = vrot.slane %v1285, 7
    %v1327 = vrot.slane %v1298, 6
    %v1328 = vrot.slane %v1311, 5
    %vm1329 = vcmask 1040384
    %v1330 = vsel %vm1329, %v1272, %v1326
    %vm1331 = vcmask 1042434
    %v1332 = vsel %vm1331, %v1327, %v1328
    %vm1333 = vcmask 1041408
    %v1334 = vsel %vm1333, %v1330, %v1332
    %v1336 = vadd.f32 %v1321, %v1334
    %v1337 = vlaneseq
    %vm1338 = vcmp.ge.s32.totalorder %v1337, 0
    %vm1339 = vcmp.lt.s32.totalorder %v1337, 512
    %vm1340 = vmand %vm1338, %vm1339
    %1341 = vst.msk [vmem:[#allocation4] sm:$0xf] %vm1340, %v1336
    %1342 = vst.msk [vmem:[#allocation2] sm:$0x1] %vm1214, %v1189
    // Predicated region
    $region34: #{amil_attention.1} parent=1 // pred_check
      %p1343 = pneg %p72
    $region35: #{amil_attention.1} parent=1 // pred_check_branch
      %1345 = sbr.rel (%p1343) target = $region37
    $region36: #{amil_attention.1} parent=1 // pred_region
      %v1346 = vld [vmem:[#allocation4] sm:$0xf]
      %1347 = vst.msk [vmem:[%s8] sm:$0xf] %vm1340, %v1346
      %v1348 = vld [vmem:[#allocation2] sm:$0x1]
      %1349 = vst.msk [vmem:[#allocation8] sm:$0x1] %vm1214, %v1348
      %v1350 = vld [vmem:[#allocation3] sm:$0x1]
      %1351 = vst.msk [vmem:[#allocation10] sm:$0x1] %vm1214, %v1350
    $region37: #{amil_attention.1} parent=1 // pred_fallthru
      _
    // Predicated region
    $region38: #{amil_attention.1} parent=1 // pred_check
      _
    $region39: #{amil_attention.1} parent=1 // pred_check_branch
      %1353 = sbr.rel (0) target = $region41
    $region40: #{amil_attention.1} parent=1 // pred_region
      _
    $region41: #{amil_attention.1} parent=1 // pred_fallthru
      _
    // Predicated region
    $region42: #{amil_attention.1} parent=1 // pred_check
      _
    $region43: #{amil_attention.1} parent=1 // pred_check_branch
      %1355 = sbr.rel (0) target = $region45
    $region44: #{amil_attention.1} parent=1 // pred_region
      %1357 = vsyncadd [#allocation9], 0
      %s1359 = sshll.u32 [#allocation8], 4
      %s1360 = int_to_ptr.vmem [resolvable:$true] %s1359
      %s1361 = sshll.u32 %s9, 4
      %s1362 = int_to_ptr.hbm [resolvable:$true] %s1361
      %1364 = dma.vmem_to_hbm [thread:$0]  %s1360, 16, %s1362, [#allocation9]
    $region45: #{amil_attention.1} parent=1 // pred_fallthru
      _
    // Predicated region
    $region46: #{amil_attention.1} parent=1 // pred_check
      _
    $region47: #{amil_attention.1} parent=1 // pred_check_branch
      %1366 = sbr.rel (0) target = $region49
    $region48: #{amil_attention.1} parent=1 // pred_region
      %1368 = vsyncadd [#allocation11], 0
      %s1370 = sshll.u32 [#allocation10], 4
      %s1371 = int_to_ptr.vmem [resolvable:$true] %s1370
      %s1372 = sshll.u32 %s10, 4
      %s1373 = int_to_ptr.hbm [resolvable:$true] %s1372
      %1375 = dma.vmem_to_hbm [thread:$0]  %s1371, 16, %s1373, [#allocation11]
    $region49: #{amil_attention.1} parent=1 // pred_fallthru
      _
    // Predicated region
    $region50: #{amil_attention.1} parent=1 // pred_check
      _
    $region51: #{amil_attention.1} parent=1 // pred_check_branch
      %1377 = sbr.rel (0) target = $region53
    $region52: #{amil_attention.1} parent=1 // pred_region
      _
    $region53: #{amil_attention.1} parent=1 // pred_fallthru
      _
    // Predicated region
    $region54: #{amil_attention.1} parent=1 // pred_check
      _
    $region55: #{amil_attention.1} parent=1 // pred_check_branch
      %1379 = sbr.rel (0) target = $region57
    $region56: #{amil_attention.1} parent=1 // pred_region
      %1381 = dma.done [#allocation9], 16
    $region57: #{amil_attention.1} parent=1 // pred_fallthru
      _
    // Predicated region
    $region58: #{amil_attention.1} parent=1 // pred_check
      _
    $region59: #{amil_attention.1} parent=1 // pred_check_branch
      %1383 = sbr.rel (0) target = $region61
    $region60: #{amil_attention.1} parent=1 // pred_region
      %1385 = dma.done [#allocation11], 16
    $region61: #{amil_attention.1} parent=1 // pred_fallthru
      _
    %1386 = vsyncpa [#allocation9], 1
    %1387 = vsyncpa [#allocation11], 1

</llo_original>
